<compile_context>
chip_gen: v5e
topology: v5e:2x2
jax: 0.10.0
libtpu: 0.0.40
codegen_flags: <defaults>
</compile_context>

<pallas_src>
import functools

import jax
import jax.numpy as jnp
from jax.experimental import pallas as pl
from jax.experimental.pallas import tpu as pltpu

NEG_SLOPE = 0.2  # DGL GATConv default LeakyReLU negative slope


def _gat_conv_kernel(x_ref, adj_ref, wz_ref, elt_ref, er_ref, b_ref, out_ref,
                     *, num_heads, out_per_head, apply_elu):
    """One grid step == one tile of TM destination rows, all heads at once."""
    # Fused lane-dense projection for all heads: (N, Fin) @ (Fin, H*Fout).
    # bf16 operands feed the MXU, f32 accumulation.
    z_all = jnp.dot(x_ref[...], wz_ref[...],
                    preferred_element_type=jnp.float32)            # (N, H*Fout)
    z_all_bf = z_all.astype(jnp.bfloat16)

    no_edge = adj_ref[...] <= 0                                    # (TM, N)
    el_t = elt_ref[...]                                            # (H, N)  f32
    er = er_ref[...]                                               # (TM, H) f32

    outs = []
    for h in range(num_heads):                                     # H is small & static
        # scores[dst, src] = LeakyReLU(er[dst] + el[src])
        s = er[:, h:h + 1] + el_t[h:h + 1, :]                      # (TM, N)
        s = jnp.where(s > 0, s, NEG_SLOPE * s)                     # LeakyReLU
        s = jnp.where(no_edge, jnp.float32(-1e30), s)              # mask non-edges

        # masked softmax over incoming edges (src axis); f32 math.
        m = jnp.max(s, axis=1, keepdims=True)                      # (TM, 1)
        p = jnp.exp(s - m)                                         # masked -> underflow to 0
        denom = jnp.sum(p, axis=1, keepdims=True)                  # (TM, 1), >= 1

        # aggregate neighbor features (bf16 MXU matmul, f32 acc); fold 1/denom
        # into the small (TM, Fout) output instead of the (TM, N) alpha.
        z_h = z_all_bf[:, h * out_per_head:(h + 1) * out_per_head]  # (N, Fout)
        agg = jnp.dot(p.astype(jnp.bfloat16), z_h,
                      preferred_element_type=jnp.float32)           # (TM, Fout)
        out_h = agg * pl.reciprocal(denom, approx=True) + b_ref[h:h + 1, :]
        outs.append(out_h)

    res = outs[0] if num_heads == 1 else jnp.concatenate(outs, axis=-1)
    if apply_elu:
        # ELU fused into the epilogue (== activation after .flatten(1)).
        res = jnp.where(res > 0, res, jnp.exp(jnp.minimum(res, 0.0)) - 1.0)
    out_ref[...] = res                                              # (TM, H*Fout)


def _pick_row_tile(n, max_rows=128):
    """Largest row tile <= max_rows that divides n and keeps bf16 sublane tiling."""
    if n <= max_rows:
        return n
    tm = (max_rows // 16) * 16
    while tm >= 16:
        if n % tm == 0:
            return tm
        tm -= 16
    return n


def gat_conv(x, adj_bf16, w, al, ar, b, *, apply_elu, max_rows=128):
    """Dense GATConv.

    x:        (N, Fin)  node features (any float dtype)
    adj_bf16: (N, N)    bf16 0/1 mask, adj[dst, src] = 1 iff edge src -> dst
    w:        (H, Fin, Fout)   per-head projection
    al, ar:   (H, Fout)        per-head attention vectors
    b:        (H, Fout)        per-head bias
    Returns (N, H*Fout) float32 in head-major lane layout (== torch flatten(1)).
    """
    N, Fin = x.shape
    H, _, Fout = w.shape
    tm = _pick_row_tile(N, max_rows)
    n_tiles = N // tm

    x_f32 = x.astype(jnp.float32)
    # Heads stacked along lanes: W_all[:, h*Fout:(h+1)*Fout] = W_h.
    w_all = jnp.transpose(w, (1, 0, 2)).reshape(Fin, H * Fout)
    # Attention-vector projections folded into the weights (tiny XLA matmuls):
    #   el[src, h] = a_l_h . (x_src W_h),  er[dst, h] = a_r_h . (x_dst W_h)
    a_l_w = jnp.einsum('hio,ho->hi', w, al)                       # (H, Fin)
    w_r = jnp.einsum('hio,ho->ih', w, ar)                         # (Fin, H)
    el_t = jnp.einsum('hf,nf->hn', a_l_w, x_f32)                  # (H, N)
    er = x_f32 @ w_r                                              # (N, H)
    b2 = b.astype(jnp.float32)                                    # (H, Fout)

    kernel = functools.partial(_gat_conv_kernel, num_heads=H,
                               out_per_head=Fout, apply_elu=apply_elu)

    # TODO(synk): for very large N also tile the src axis with an online
    # softmax; at these sizes the (TM, N) row block comfortably fits VMEM on
    # v5e/v6e/v7x (no explicit vmem_limit_bytes needed).
    return pl.pallas_call(
        kernel,
        out_shape=jax.ShapeDtypeStruct((N, H * Fout), jnp.float32),
        grid_spec=pltpu.PrefetchScalarGridSpec(
            num_scalar_prefetch=0,
            grid=(n_tiles,),
            in_specs=[
                pl.BlockSpec((N, Fin), lambda i: (0, 0)),          # x (all src, shared)
                pl.BlockSpec((tm, N), lambda i: (i, 0)),           # adj row tile (bf16)
                pl.BlockSpec((Fin, H * Fout), lambda i: (0, 0)),   # fused W (bf16)
                pl.BlockSpec((H, N), lambda i: (0, 0)),            # el^T (shared, f32)
                pl.BlockSpec((tm, H), lambda i: (i, 0)),           # er for dst tile
                pl.BlockSpec((H, Fout), lambda i: (0, 0)),         # bias
            ],
            out_specs=pl.BlockSpec((tm, H * Fout), lambda i: (i, 0)),
        ),
        compiler_params=pltpu.CompilerParams(
            dimension_semantics=("parallel",)),
    )(x.astype(jnp.bfloat16), adj_bf16, w_all.astype(jnp.bfloat16),
      el_t, er, b2)


def init_gat_params(key, in_feats, hidden_feats, out_feats, num_layers, num_heads):
    """Deterministic parameter init matching the GAT module's layer shapes."""
    specs = [(in_feats, hidden_feats, num_heads)]
    for _ in range(num_layers - 2):
        specs.append((hidden_feats * num_heads, hidden_feats, num_heads))
    specs.append((hidden_feats * num_heads, out_feats, 1))

    params = []
    for (fin, fout, h) in specs:
        key, k1, k2, k3 = jax.random.split(key, 4)
        scale = 1.0 / jnp.sqrt(jnp.float32(fin))
        w = jax.random.normal(k1, (h, fin, fout), jnp.float32) * scale
        al = jax.random.normal(k2, (h, fout), jnp.float32) * 0.1
        ar = jax.random.normal(k3, (h, fout), jnp.float32) * 0.1
        b = jnp.zeros((h, fout), jnp.float32)
        params.append((w, al, ar, b))
    return params


def gat_forward(params, adj, features):
    """Mirrors GAT.forward: (dropout -> GATConv -> flatten(1) -> activation)*,
    then last GATConv (1 head) -> mean over heads."""
    adj_bf = adj.astype(jnp.bfloat16)   # 0/1 mask; halves the N^2 HBM traffic
    x = features
    for (w, al, ar, b) in params[:-1]:
        # TODO(synk): nn.Dropout is identity in eval mode; training dropout omitted.
        # Output is already (N, H*Fh) lane-dense with ELU fused (== flatten(1)+activation).
        x = gat_conv(x, adj_bf, w, al, ar, b, apply_elu=True)
    w, al, ar, b = params[-1]
    out = gat_conv(x, adj_bf, w, al, ar, b, apply_elu=False)       # (N, Fout), 1 head
    return out                                                     # .mean(1) over 1 head == identity


if __name__ == "__main__":
    # Small deterministic problem: 256 nodes, 16 input feats, 16 hidden,
    # 2 heads, 3 layers, 8 output feats.  Row tile = 128 -> grid=(2,).
    N = 256
    in_feats, hidden_feats, out_feats = 16, 16, 8
    num_layers, num_heads = 3, 2

    key = jax.random.PRNGKey(0)
    k_feat, k_adj, k_params = jax.random.split(key, 3)

    features = jax.random.normal(k_feat, (N, in_feats), jnp.float32)

    # Dense random adjacency (dst, src) with self-loops so every node has >=1 in-edge.
    adj = (jax.random.uniform(k_adj, (N, N)) < 0.05).astype(jnp.float32)
    adj = jnp.maximum(adj, jnp.eye(N, dtype=jnp.float32))

    params = init_gat_params(k_params, in_feats, hidden_feats, out_feats,
                             num_layers, num_heads)

    out = gat_forward(params, adj, features)   # (N, out_feats)
    jax.block_until_ready(out)
    assert out.shape == (N, out_feats)
    assert bool(jnp.all(jnp.isfinite(out)))
    print("KERNEL_OK")
</pallas_src>

<mosaic_0001>
module attributes {stable_mosaic.version = 11 : i64} {
  func.func @_gat_conv_kernel(%arg0: i32, %arg1: memref<256x16xbf16, #tpu.memory_space<vmem>>, %arg2: memref<128x256xbf16, #tpu.memory_space<vmem>>, %arg3: memref<16x32xbf16, #tpu.memory_space<vmem>>, %arg4: memref<2x256xf32, #tpu.memory_space<vmem>>, %arg5: memref<128x2xf32, #tpu.memory_space<vmem>>, %arg6: memref<2x16xf32, #tpu.memory_space<vmem>>, %arg7: memref<128x32xf32, #tpu.memory_space<vmem>>) attributes {dimension_semantics = [#tpu.dimension_semantics<parallel>], iteration_bounds = array<i64: 2>, scalar_prefetch = 0 : i64, scratch_operands = 0 : i64, tpu.core_type = #tpu.core_type<tc>, window_params = [{pipeline_mode = #tpu.pipeline_mode<synchronous>, transform_indices = @transform_0, window_bounds = array<i64: 256, 16>}, {transform_indices = @transform_1, window_bounds = array<i64: 128, 256>}, {pipeline_mode = #tpu.pipeline_mode<synchronous>, transform_indices = @transform_2, window_bounds = array<i64: 16, 32>}, {pipeline_mode = #tpu.pipeline_mode<synchronous>, transform_indices = @transform_3, window_bounds = array<i64: 2, 256>}, {transform_indices = @transform_4, window_bounds = array<i64: 128, 2>}, {pipeline_mode = #tpu.pipeline_mode<synchronous>, transform_indices = @transform_5, window_bounds = array<i64: 2, 16>}, {transform_indices = @transform_6, window_bounds = array<i64: 128, 32>}]} {
    %c0 = arith.constant 0 : index
    %c0_0 = arith.constant 0 : index
    %0 = vector.load %arg1[%c0, %c0_0] : memref<256x16xbf16, #tpu.memory_space<vmem>>, vector<256x16xbf16>
    %c0_1 = arith.constant 0 : index
    %c0_2 = arith.constant 0 : index
    %1 = vector.load %arg3[%c0_1, %c0_2] : memref<16x32xbf16, #tpu.memory_space<vmem>>, vector<16x32xbf16>
    %cst = arith.constant dense<0.000000e+00> : vector<256x32xf32>
    %2 = tpu.matmul %0, %1, %cst {dimension_numbers = #tpu.dot_dimension_numbers<[1], [0], [0], [1], [0, 0, 1, 1], [], []>} : vector<256x16xbf16>, vector<16x32xbf16>, vector<256x32xf32> -> vector<256x32xf32>
    %3 = arith.truncf %2 : vector<256x32xf32> to vector<256x32xbf16>
    %c0_3 = arith.constant 0 : index
    %c0_4 = arith.constant 0 : index
    %4 = vector.load %arg2[%c0_3, %c0_4] : memref<128x256xbf16, #tpu.memory_space<vmem>>, vector<128x256xbf16>
    %cst_5 = arith.constant 0.000000e+00 : bf16
    %5 = vector.broadcast %cst_5 : bf16 to vector<128x256xbf16>
    %6 = arith.cmpf ole, %4, %5 : vector<128x256xbf16>
    %c0_6 = arith.constant 0 : index
    %c0_7 = arith.constant 0 : index
    %7 = vector.load %arg4[%c0_6, %c0_7] : memref<2x256xf32, #tpu.memory_space<vmem>>, vector<2x256xf32>
    %c0_8 = arith.constant 0 : index
    %c0_9 = arith.constant 0 : index
    %8 = vector.load %arg5[%c0_8, %c0_9] : memref<128x2xf32, #tpu.memory_space<vmem>>, vector<128x2xf32>
    %9 = vector.extract_strided_slice %8 {offsets = [0, 0], sizes = [128, 1], strides = [1, 1]} : vector<128x2xf32> to vector<128x1xf32>
    %10 = vector.extract_strided_slice %7 {offsets = [0, 0], sizes = [1, 256], strides = [1, 1]} : vector<2x256xf32> to vector<1x256xf32>
    %11 = vector.broadcast %9 : vector<128x1xf32> to vector<128x256xf32>
    %12 = vector.broadcast %10 : vector<1x256xf32> to vector<128x256xf32>
    %13 = arith.addf %11, %12 : vector<128x256xf32>
    %cst_10 = arith.constant 0.000000e+00 : f32
    %14 = vector.broadcast %cst_10 : f32 to vector<128x256xf32>
    %15 = arith.cmpf ogt, %13, %14 : vector<128x256xf32>
    %cst_11 = arith.constant 2.000000e-01 : f32
    %16 = vector.broadcast %cst_11 : f32 to vector<128x256xf32>
    %17 = arith.mulf %16, %13 : vector<128x256xf32>
    %18 = arith.select %15, %13, %17 : vector<128x256xi1>, vector<128x256xf32>
    %cst_12 = arith.constant -1.000000e+30 : f32
    %19 = vector.broadcast %cst_12 : f32 to vector<128x256xf32>
    %20 = arith.select %6, %19, %18 : vector<128x256xi1>, vector<128x256xf32>
    %cst_13 = arith.constant dense<0xFF800000> : vector<128xf32>
    %21 = vector.multi_reduction <maximumf>, %20, %cst_13 [1] : vector<128x256xf32> to vector<128xf32>
    %22 = vector.shape_cast %21 : vector<128xf32> to vector<128x1xf32>
    %23 = vector.broadcast %22 : vector<128x1xf32> to vector<128x256xf32>
    %24 = arith.subf %20, %23 : vector<128x256xf32>
    %25 = math.exp %24 : vector<128x256xf32>
    %cst_14 = arith.constant dense<0.000000e+00> : vector<128xf32>
    %26 = vector.multi_reduction <add>, %25, %cst_14 [1] : vector<128x256xf32> to vector<128xf32>
    %27 = vector.shape_cast %26 : vector<128xf32> to vector<128x1xf32>
    %28 = vector.extract_strided_slice %3 {offsets = [0, 0], sizes = [256, 16], strides = [1, 1]} : vector<256x32xbf16> to vector<256x16xbf16>
    %29 = arith.truncf %25 : vector<128x256xf32> to vector<128x256xbf16>
    %cst_15 = arith.constant dense<0.000000e+00> : vector<128x16xf32>
    %30 = tpu.matmul %29, %28, %cst_15 {dimension_numbers = #tpu.dot_dimension_numbers<[1], [0], [0], [1], [0, 0, 1, 1], [], []>} : vector<128x256xbf16>, vector<256x16xbf16>, vector<128x16xf32> -> vector<128x16xf32>
    %31 = tpu.reciprocal %27 {approx = true} : vector<128x1xf32> -> vector<128x1xf32>
    %32 = vector.broadcast %31 : vector<128x1xf32> to vector<128x16xf32>
    %33 = arith.mulf %30, %32 : vector<128x16xf32>
    %c0_16 = arith.constant 0 : index
    %c0_17 = arith.constant 0 : index
    %34 = vector.load %arg6[%c0_16, %c0_17] : memref<2x16xf32, #tpu.memory_space<vmem>>, vector<1x16xf32>
    %35 = vector.broadcast %34 : vector<1x16xf32> to vector<128x16xf32>
    %36 = arith.addf %33, %35 : vector<128x16xf32>
    %37 = vector.extract_strided_slice %8 {offsets = [0, 1], sizes = [128, 1], strides = [1, 1]} : vector<128x2xf32> to vector<128x1xf32>
    %38 = vector.extract_strided_slice %7 {offsets = [1, 0], sizes = [1, 256], strides = [1, 1]} : vector<2x256xf32> to vector<1x256xf32>
    %39 = vector.broadcast %37 : vector<128x1xf32> to vector<128x256xf32>
    %40 = vector.broadcast %38 : vector<1x256xf32> to vector<128x256xf32>
    %41 = arith.addf %39, %40 : vector<128x256xf32>
    %cst_18 = arith.constant 0.000000e+00 : f32
    %42 = vector.broadcast %cst_18 : f32 to vector<128x256xf32>
    %43 = arith.cmpf ogt, %41, %42 : vector<128x256xf32>
    %cst_19 = arith.constant 2.000000e-01 : f32
    %44 = vector.broadcast %cst_19 : f32 to vector<128x256xf32>
    %45 = arith.mulf %44, %41 : vector<128x256xf32>
    %46 = arith.select %43, %41, %45 : vector<128x256xi1>, vector<128x256xf32>
    %cst_20 = arith.constant -1.000000e+30 : f32
    %47 = vector.broadcast %cst_20 : f32 to vector<128x256xf32>
    %48 = arith.select %6, %47, %46 : vector<128x256xi1>, vector<128x256xf32>
    %cst_21 = arith.constant dense<0xFF800000> : vector<128xf32>
    %49 = vector.multi_reduction <maximumf>, %48, %cst_21 [1] : vector<128x256xf32> to vector<128xf32>
    %50 = vector.shape_cast %49 : vector<128xf32> to vector<128x1xf32>
    %51 = vector.broadcast %50 : vector<128x1xf32> to vector<128x256xf32>
    %52 = arith.subf %48, %51 : vector<128x256xf32>
    %53 = math.exp %52 : vector<128x256xf32>
    %cst_22 = arith.constant dense<0.000000e+00> : vector<128xf32>
    %54 = vector.multi_reduction <add>, %53, %cst_22 [1] : vector<128x256xf32> to vector<128xf32>
    %55 = vector.shape_cast %54 : vector<128xf32> to vector<128x1xf32>
    %56 = vector.extract_strided_slice %3 {offsets = [0, 16], sizes = [256, 16], strides = [1, 1]} : vector<256x32xbf16> to vector<256x16xbf16>
    %57 = arith.truncf %53 : vector<128x256xf32> to vector<128x256xbf16>
    %cst_23 = arith.constant dense<0.000000e+00> : vector<128x16xf32>
    %58 = tpu.matmul %57, %56, %cst_23 {dimension_numbers = #tpu.dot_dimension_numbers<[1], [0], [0], [1], [0, 0, 1, 1], [], []>} : vector<128x256xbf16>, vector<256x16xbf16>, vector<128x16xf32> -> vector<128x16xf32>
    %59 = tpu.reciprocal %55 {approx = true} : vector<128x1xf32> -> vector<128x1xf32>
    %60 = vector.broadcast %59 : vector<128x1xf32> to vector<128x16xf32>
    %61 = arith.mulf %58, %60 : vector<128x16xf32>
    %c1 = arith.constant 1 : index
    %c0_24 = arith.constant 0 : index
    %62 = vector.load %arg6[%c1, %c0_24] : memref<2x16xf32, #tpu.memory_space<vmem>>, vector<1x16xf32>
    %63 = vector.broadcast %62 : vector<1x16xf32> to vector<128x16xf32>
    %64 = arith.addf %61, %63 : vector<128x16xf32>
    %65 = tpu.concatenate %36, %64 in 1 : vector<128x16xf32>, vector<128x16xf32> -> vector<128x32xf32>
    %cst_25 = arith.constant 0.000000e+00 : f32
    %66 = vector.broadcast %cst_25 : f32 to vector<128x32xf32>
    %67 = arith.cmpf ogt, %65, %66 : vector<128x32xf32>
    %cst_26 = arith.constant 0.000000e+00 : f32
    %68 = vector.broadcast %cst_26 : f32 to vector<128x32xf32>
    %69 = arith.minimumf %65, %68 : vector<128x32xf32>
    %70 = math.exp %69 : vector<128x32xf32>
    %cst_27 = arith.constant 1.000000e+00 : f32
    %71 = vector.broadcast %cst_27 : f32 to vector<128x32xf32>
    %72 = arith.subf %70, %71 : vector<128x32xf32>
    %73 = arith.select %67, %65, %72 : vector<128x32xi1>, vector<128x32xf32>
    %c0_28 = arith.constant 0 : index
    %c0_29 = arith.constant 0 : index
    %74 = vector.load %arg7[%c0_28, %c0_29] : memref<128x32xf32, #tpu.memory_space<vmem>>, vector<128x32xf32>
    tpu.vector_store %arg7[%c0_28, %c0_29], %73 {strides = array<i32>} : memref<128x32xf32, #tpu.memory_space<vmem>>, vector<128x32xf32>,
    return
  }
  func.func @transform_0(%arg0: i32) -> (i32, i32) {
    %c0_i32 = arith.constant 0 : i32
    %c0_i32_0 = arith.constant 0 : i32
    %c0_i32_1 = arith.constant 0 : i32
    return %c0_i32, %c0_i32_0 : i32, i32
  }
  func.func @transform_1(%arg0: i32) -> (i32, i32) {
    %c0_i32 = arith.constant 0 : i32
    %c0_i32_0 = arith.constant 0 : i32
    return %arg0, %c0_i32 : i32, i32
  }
  func.func @transform_2(%arg0: i32) -> (i32, i32) {
    %c0_i32 = arith.constant 0 : i32
    %c0_i32_0 = arith.constant 0 : i32
    %c0_i32_1 = arith.constant 0 : i32
    return %c0_i32, %c0_i32_0 : i32, i32
  }
  func.func @transform_3(%arg0: i32) -> (i32, i32) {
    %c0_i32 = arith.constant 0 : i32
    %c0_i32_0 = arith.constant 0 : i32
    %c0_i32_1 = arith.constant 0 : i32
    return %c0_i32, %c0_i32_0 : i32, i32
  }
  func.func @transform_4(%arg0: i32) -> (i32, i32) {
    %c0_i32 = arith.constant 0 : i32
    %c0_i32_0 = arith.constant 0 : i32
    return %arg0, %c0_i32 : i32, i32
  }
  func.func @transform_5(%arg0: i32) -> (i32, i32) {
    %c0_i32 = arith.constant 0 : i32
    %c0_i32_0 = arith.constant 0 : i32
    %c0_i32_1 = arith.constant 0 : i32
    return %c0_i32, %c0_i32_0 : i32, i32
  }
  func.func @transform_6(%arg0: i32) -> (i32, i32) {
    %c0_i32 = arith.constant 0 : i32
    %c0_i32_0 = arith.constant 0 : i32
    return %arg0, %c0_i32 : i32, i32
  }
}

</mosaic_0001>

<llo_original>
// kernel: tpu_custom_call.1
$region0: #{tpu_custom_call.1}
  #allocation0 [shape = 'u32[]', space=smem, size = 0x4, offset = 0x4, fixed_abs, tag = 'smem constant byte address 0x4 - core index']
  #allocation1 [shape = 'u32[72,128]{1,0:T(1,128)}', space=vmem, size = 0x9000, scoped, tag = 'internal scratch']
  %s0 = inlined_call_operand.vmem [shape: bf16[256,16], index: 0, kind: input, shape index: {}]
  %s1 = inlined_call_operand.vmem [shape: bf16[256,256], index: 1, kind: input, shape index: {}]
  %s2 = inlined_call_operand.vmem [shape: bf16[16,32], index: 2, kind: input, shape index: {}]
  %s3 = inlined_call_operand.vmem [shape: f32[2,256], index: 3, kind: input, shape index: {}]
  %s4 = inlined_call_operand.vmem [shape: f32[256,2], index: 4, kind: input, shape index: {}]
  %s5 = inlined_call_operand.vmem [shape: f32[2,16], index: 5, kind: input, shape index: {}]
  %s6 = inlined_call_operand.vmem [shape: f32[256,32], index: 6, kind: output, shape index: {}]
  %s7 = sld [smem:[#allocation0]]
  $region57: #{tpu_custom_call.1} parent=0
    _
  %s9 = ssub.s32 1, %s7
  %s10 = scalar_select 0, %s9, %s7
  loop: start=0, step=1, limit=4
  $region2: #{tpu_custom_call.1} parent=0 // loop_pre_header
    _
  $region3: #{tpu_custom_call.1} parent=0 // loop_header
    %s12 = sphi 0, %s16
    %p13 = scmp.ge.s32.totalorder %s12, 4
    %s20 = sphi 0, %s20
    %s22 = sphi 0, %s20
    %s23 = sphi 0, %s22
    %s37 = sphi 0, %s23
    %s43 = sphi 0, %s45
    %s46 = sphi 0, %s43
    %s47 = sphi 0, %s46
    %s63 = sphi 0, %s47
    %s67 = sphi 0, %s67
    %s69 = sphi 0, %s67
    %s70 = sphi 0, %s69
    %s84 = sphi 0, %s70
    %s88 = sphi 0, %s88
    %s90 = sphi 0, %s88
    %s91 = sphi 0, %s90
    %s105 = sphi 0, %s91
    %s111 = sphi 0, %s113
    %s114 = sphi 0, %s111
    %s115 = sphi 0, %s114
    %s131 = sphi 0, %s115
    %s135 = sphi 0, %s135
    %s137 = sphi 0, %s135
    %s138 = sphi 0, %s137
    %s152 = sphi 0, %s138
    %s158 = sphi 0, %s160
    %s161 = sphi 0, %s158
    %s162 = sphi 0, %s161
    %s178 = sphi 0, %s162
  $region4: #{tpu_custom_call.1} parent=0 // loop_header_branch
    %15 = sbr.rel (%p13) target = $region8
  $region5: #{tpu_custom_call.1} parent=0 // loop_body
    %s17 = ssub.s32 %s12, 1
    %s18 = ssub.s32 %s12, 2
    %s19 = sadd.s32 %s12, 1
    %s21 = sadd.s32 %s20, 1
    %p24 = scmp.eq.s32.totalorder %s12, 1
    %p25 = scmp.ne.s32.totalorder %s20, %s22
    %p26 = scmp.eq.s32.totalorder %s12, 0
    %p27 = por %p25, %p26
    %p28 = scmp.ne.s32.totalorder %s20, %s22
    %p29 = scmp.eq.s32.totalorder %s17, 1
    %p30 = por %p28, %p29
    %p31 = scmp.ne.s32.totalorder %s22, %s23
    %p32 = scmp.eq.s32.totalorder %s17, 0
    %p33 = por %p31, %p32
    %p34 = scmp.ne.s32.totalorder %s22, %s23
    %p35 = scmp.eq.s32.totalorder %s18, 1
    %p36 = por %p34, %p35
    %p38 = scmp.ne.s32.totalorder %s23, %s37
    %p39 = scmp.eq.s32.totalorder %s18, 0
    %p40 = por %p38, %p39
    %s41 = ssub.s32 %s12, %s19
    %p42 = scmp.eq.s32.totalorder %s41, 0
    %s44 = sadd.s32 %s43, 1
    %s45 = scalar_select %p42, %s43, %s44
    %p48 = pneg %p42
    %p49 = scmp.eq.s32.totalorder %s12, 1
    %p50 = por %p48, %p49
    %p51 = scmp.ne.s32.totalorder %s43, %s46
    %p52 = scmp.eq.s32.totalorder %s12, 0
    %p53 = por %p51, %p52
    %p54 = scmp.ne.s32.totalorder %s43, %s46
    %p55 = scmp.eq.s32.totalorder %s17, 1
    %p56 = por %p54, %p55
    %p57 = scmp.ne.s32.totalorder %s46, %s47
    %p58 = scmp.eq.s32.totalorder %s17, 0
    %p59 = por %p57, %p58
    %p60 = scmp.ne.s32.totalorder %s46, %s47
    %p61 = scmp.eq.s32.totalorder %s18, 1
    %p62 = por %p60, %p61
    %p64 = scmp.ne.s32.totalorder %s47, %s63
    %p65 = scmp.eq.s32.totalorder %s18, 0
    %p66 = por %p64, %p65
    %s68 = sadd.s32 %s67, 1
    %p71 = scmp.eq.s32.totalorder %s12, 1
    %p72 = scmp.ne.s32.totalorder %s67, %s69
    %p73 = scmp.eq.s32.totalorder %s12, 0
    %p74 = por %p72, %p73
    %p75 = scmp.ne.s32.totalorder %s67, %s69
    %p76 = scmp.eq.s32.totalorder %s17, 1
    %p77 = por %p75, %p76
    %p78 = scmp.ne.s32.totalorder %s69, %s70
    %p79 = scmp.eq.s32.totalorder %s17, 0
    %p80 = por %p78, %p79
    %p81 = scmp.ne.s32.totalorder %s69, %s70
    %p82 = scmp.eq.s32.totalorder %s18, 1
    %p83 = por %p81, %p82
    %p85 = scmp.ne.s32.totalorder %s70, %s84
    %p86 = scmp.eq.s32.totalorder %s18, 0
    %p87 = por %p85, %p86
    %s89 = sadd.s32 %s88, 1
    %p92 = scmp.eq.s32.totalorder %s12, 1
    %p93 = scmp.ne.s32.totalorder %s88, %s90
    %p94 = scmp.eq.s32.totalorder %s12, 0
    %p95 = por %p93, %p94
    %p96 = scmp.ne.s32.totalorder %s88, %s90
    %p97 = scmp.eq.s32.totalorder %s17, 1
    %p98 = por %p96, %p97
    %p99 = scmp.ne.s32.totalorder %s90, %s91
    %p100 = scmp.eq.s32.totalorder %s17, 0
    %p101 = por %p99, %p100
    %p102 = scmp.ne.s32.totalorder %s90, %s91
    %p103 = scmp.eq.s32.totalorder %s18, 1
    %p104 = por %p102, %p103
    %p106 = scmp.ne.s32.totalorder %s91, %s105
    %p107 = scmp.eq.s32.totalorder %s18, 0
    %p108 = por %p106, %p107
    %s109 = ssub.s32 %s12, %s19
    %p110 = scmp.eq.s32.totalorder %s109, 0
    %s112 = sadd.s32 %s111, 1
    %s113 = scalar_select %p110, %s111, %s112
    %p116 = pneg %p110
    %p117 = scmp.eq.s32.totalorder %s12, 1
    %p118 = por %p116, %p117
    %p119 = scmp.ne.s32.totalorder %s111, %s114
    %p120 = scmp.eq.s32.totalorder %s12, 0
    %p121 = por %p119, %p120
    %p122 = scmp.ne.s32.totalorder %s111, %s114
    %p123 = scmp.eq.s32.totalorder %s17, 1
    %p124 = por %p122, %p123
    %p125 = scmp.ne.s32.totalorder %s114, %s115
    %p126 = scmp.eq.s32.totalorder %s17, 0
    %p127 = por %p125, %p126
    %p128 = scmp.ne.s32.totalorder %s114, %s115
    %p129 = scmp.eq.s32.totalorder %s18, 1
    %p130 = por %p128, %p129
    %p132 = scmp.ne.s32.totalorder %s115, %s131
    %p133 = scmp.eq.s32.totalorder %s18, 0
    %p134 = por %p132, %p133
    %s136 = sadd.s32 %s135, 1
    %p139 = scmp.eq.s32.totalorder %s12, 1
    %p140 = scmp.ne.s32.totalorder %s135, %s137
    %p141 = scmp.eq.s32.totalorder %s12, 0
    %p142 = por %p140, %p141
    %p143 = scmp.ne.s32.totalorder %s135, %s137
    %p144 = scmp.eq.s32.totalorder %s17, 1
    %p145 = por %p143, %p144
    %p146 = scmp.ne.s32.totalorder %s137, %s138
    %p147 = scmp.eq.s32.totalorder %s17, 0
    %p148 = por %p146, %p147
    %p149 = scmp.ne.s32.totalorder %s137, %s138
    %p150 = scmp.eq.s32.totalorder %s18, 1
    %p151 = por %p149, %p150
    %p153 = scmp.ne.s32.totalorder %s138, %s152
    %p154 = scmp.eq.s32.totalorder %s18, 0
    %p155 = por %p153, %p154
    %s156 = ssub.s32 %s12, %s19
    %p157 = scmp.eq.s32.totalorder %s156, 0
    %s159 = sadd.s32 %s158, 1
    %s160 = scalar_select %p157, %s158, %s159
    %p163 = pneg %p157
    %p164 = scmp.eq.s32.totalorder %s12, 1
    %p165 = por %p163, %p164
    %p166 = scmp.ne.s32.totalorder %s158, %s161
    %p167 = scmp.eq.s32.totalorder %s12, 0
    %p168 = por %p166, %p167
    %p169 = scmp.ne.s32.totalorder %s158, %s161
    %p170 = scmp.eq.s32.totalorder %s17, 1
    %p171 = por %p169, %p170
    %p172 = scmp.ne.s32.totalorder %s161, %s162
    %p173 = scmp.eq.s32.totalorder %s17, 0
    %p174 = por %p172, %p173
    %p175 = scmp.ne.s32.totalorder %s161, %s162
    %p176 = scmp.eq.s32.totalorder %s18, 1
    %p177 = por %p175, %p176
    %p179 = scmp.ne.s32.totalorder %s162, %s178
    %p180 = scmp.eq.s32.totalorder %s18, 0
    %p181 = por %p179, %p180
    %p182 = scmp.le.s32.totalorder 1, %s12
    %p183 = scmp.lt.s32.totalorder %s12, 3
    %p184 = pnand %p182, %p183
    %p185 = pneg %p184
    // Predicated region
    $region9: #{tpu_custom_call.1} parent=5 // pred_check
      _
    $region10: #{tpu_custom_call.1} parent=5 // pred_check_branch
      %187 = sbr.rel (%p184) target = $region12
    $region11: #{tpu_custom_call.1} parent=5 // pred_region
      %s188 = ssub.s32 %s12, 1
      // Predicated region
      $region13: #{tpu_custom_call.1} parent=11 // pred_check
        %p189 = pneg %p33
      $region14: #{tpu_custom_call.1} parent=11 // pred_check_branch
        %191 = sbr.rel (%p189) target = $region16
      $region15: #{tpu_custom_call.1} parent=11 // pred_region
        _
      $region16: #{tpu_custom_call.1} parent=11 // pred_fallthru
        _
      // Predicated region
      $region17: #{tpu_custom_call.1} parent=11 // pred_check
        %p192 = pneg %p80
      $region18: #{tpu_custom_call.1} parent=11 // pred_check_branch
        %194 = sbr.rel (%p192) target = $region20
      $region19: #{tpu_custom_call.1} parent=11 // pred_region
        _
      $region20: #{tpu_custom_call.1} parent=11 // pred_fallthru
        _
      // Predicated region
      $region21: #{tpu_custom_call.1} parent=11 // pred_check
        %p195 = pneg %p101
      $region22: #{tpu_custom_call.1} parent=11 // pred_check_branch
        %197 = sbr.rel (%p195) target = $region24
      $region23: #{tpu_custom_call.1} parent=11 // pred_region
        _
      $region24: #{tpu_custom_call.1} parent=11 // pred_fallthru
        _
      // Predicated region
      $region25: #{tpu_custom_call.1} parent=11 // pred_check
        %p198 = pneg %p148
      $region26: #{tpu_custom_call.1} parent=11 // pred_check_branch
        %200 = sbr.rel (%p198) target = $region28
      $region27: #{tpu_custom_call.1} parent=11 // pred_region
        _
      $region28: #{tpu_custom_call.1} parent=11 // pred_fallthru
        _
    $region12: #{tpu_custom_call.1} parent=5 // pred_fallthru
      _
    %p201 = scmp.lt.s32.totalorder %s12, 2
    // Predicated region
    $region29: #{tpu_custom_call.1} parent=5 // pred_check
      %p202 = pneg %p201
    $region30: #{tpu_custom_call.1} parent=5 // pred_check_branch
      %204 = sbr.rel (%p202) target = $region32
    $region31: #{tpu_custom_call.1} parent=5 // pred_region
      // Predicated region
      $region33: #{tpu_custom_call.1} parent=31 // pred_check
        %p205 = pneg %p53
      $region34: #{tpu_custom_call.1} parent=31 // pred_check_branch
        %207 = sbr.rel (%p205) target = $region36
      $region35: #{tpu_custom_call.1} parent=31 // pred_region
        %s208 = smul.u32 16, %s12
        %p209 = scmp.lt.s32.totalorder %s208, 31
        %s210 = scalar_select %p209, %s208, 31
        %s211 = smul.addr %s210, 2
        %s212 = smul.addr %s211, 4
        %s213 = scalar_lea.vmem %s1, %s212
        %s214 = smul.u32 16, %s12
      $region36: #{tpu_custom_call.1} parent=31 // pred_fallthru
        _
      // Predicated region
      $region37: #{tpu_custom_call.1} parent=31 // pred_check
        %p215 = pneg %p121
      $region38: #{tpu_custom_call.1} parent=31 // pred_check_branch
        %217 = sbr.rel (%p215) target = $region40
      $region39: #{tpu_custom_call.1} parent=31 // pred_region
        %s218 = smul.u32 16, %s12
        %p219 = scmp.lt.s32.totalorder %s218, 31
        %s220 = scalar_select %p219, %s218, 31
        %s221 = smul.addr %s220, 8
        %s222 = scalar_lea.vmem %s4, %s221
        %s223 = smul.u32 16, %s12
      $region40: #{tpu_custom_call.1} parent=31 // pred_fallthru
        _
    $region32: #{tpu_custom_call.1} parent=5 // pred_fallthru
      _
    %p224 = scmp.le.s32.totalorder 1, %s12
    %p225 = scmp.lt.s32.totalorder %s12, 3
    %p226 = pnand %p224, %p225
    %p227 = pneg %p226
    // Predicated region
    $region41: #{tpu_custom_call.1} parent=5 // pred_check
      _
    $region42: #{tpu_custom_call.1} parent=5 // pred_check_branch
      %229 = sbr.rel (%p226) target = $region44
    $region43: #{tpu_custom_call.1} parent=5 // pred_region
      %s230 = ssub.s32 %s12, 1
      %p231 = pneg %p33
      %p232 = pneg %p30
      %s233 = smul.u32 16, %s17
      %p234 = scmp.lt.s32.totalorder %s233, 31
      %s235 = scalar_select %p234, %s233, 31
      %s236 = smul.addr %s235, 2
      %s237 = smul.addr %s236, 4
      %s238 = scalar_lea.vmem %s1, %s237
      %p239 = pneg %p59
      %p240 = pneg %p56
      %p241 = pneg %p80
      %p242 = pneg %p77
      %p243 = pneg %p101
      %p244 = pneg %p98
      %s245 = smul.u32 16, %s17
      %p246 = scmp.lt.s32.totalorder %s245, 31
      %s247 = scalar_select %p246, %s245, 31
      %s248 = smul.addr %s247, 8
      %s249 = scalar_lea.vmem %s4, %s248
      %p250 = pneg %p127
      %p251 = pneg %p124
      %p252 = pneg %p148
      %p253 = pneg %p145
      %p254 = pneg %p174
      %p255 = pneg %p171
      %s256 = smul.u32 16, %s17
      %p257 = scmp.lt.s32.totalorder %s256, 31
      %s258 = scalar_select %p257, %s256, 31
      %s259 = smul.addr %s258, 8
      %s260 = scalar_lea.vmem %s6, %s259
      %s261 = smul.u32 16, %s17
      %p262 = scmp.lt.s32.totalorder %s261, 31
      %s263 = scalar_select %p262, %s261, 31
      %s264 = smul.addr %s263, 2
      %s265 = smul.addr %s264, 4
      %s266 = scalar_lea.vmem %s1, %s265
      %s267 = smul.u32 16, %s17
      %s268 = smul.u32 16, %s17
      %p269 = scmp.lt.s32.totalorder %s268, 31
      %s270 = scalar_select %p269, %s268, 31
      %s271 = smul.addr %s270, 8
      %s272 = scalar_lea.vmem %s4, %s271
      %s273 = smul.u32 16, %s17
      %s274 = smul.u32 16, %s17
      %p275 = scmp.lt.s32.totalorder %s274, 31
      %s276 = scalar_select %p275, %s274, 31
      %s277 = smul.addr %s276, 8
      %s278 = scalar_lea.vmem %s6, %s277
      %s279 = smul.u32 16, %s17
      %v281 = vld [vmem:[%s0] sm:$0xf]
      %v282 = vld [vmem:[%s0 + $0x4] sm:$0xf]
      %v283 = vld [vmem:[%s0 + $0x8] sm:$0xf]
      %v284 = vld [vmem:[%s0 + $0xc] sm:$0xf]
      %v285 = vld [vmem:[%s0 + $0x10] sm:$0xf]
      %v286 = vld [vmem:[%s0 + $0x14] sm:$0xf]
      %v287 = vld [vmem:[%s0 + $0x18] sm:$0xf]
      %v288 = vld [vmem:[%s0 + $0x1c] sm:$0xf]
      %v289 = vld [vmem:[%s0 + $0x20] sm:$0xf]
      %v290 = vld [vmem:[%s0 + $0x24] sm:$0xf]
      %v291 = vld [vmem:[%s0 + $0x28] sm:$0xf]
      %v292 = vld [vmem:[%s0 + $0x2c] sm:$0xf]
      %v293 = vld [vmem:[%s0 + $0x30] sm:$0xf]
      %v294 = vld [vmem:[%s0 + $0x34] sm:$0xf]
      %v295 = vld [vmem:[%s0 + $0x38] sm:$0xf]
      %v296 = vld [vmem:[%s0 + $0x3c] sm:$0xf]
      %v297 = vld [vmem:[%s0 + $0x40] sm:$0xf]
      %v298 = vld [vmem:[%s0 + $0x44] sm:$0xf]
      %v299 = vld [vmem:[%s0 + $0x48] sm:$0xf]
      %v300 = vld [vmem:[%s0 + $0x4c] sm:$0xf]
      %v301 = vld [vmem:[%s0 + $0x50] sm:$0xf]
      %v302 = vld [vmem:[%s0 + $0x54] sm:$0xf]
      %v303 = vld [vmem:[%s0 + $0x58] sm:$0xf]
      %v304 = vld [vmem:[%s0 + $0x5c] sm:$0xf]
      %v305 = vld [vmem:[%s0 + $0x60] sm:$0xf]
      %v306 = vld [vmem:[%s0 + $0x64] sm:$0xf]
      %v307 = vld [vmem:[%s0 + $0x68] sm:$0xf]
      %v308 = vld [vmem:[%s0 + $0x6c] sm:$0xf]
      %v309 = vld [vmem:[%s0 + $0x70] sm:$0xf]
      %v310 = vld [vmem:[%s0 + $0x74] sm:$0xf]
      %v311 = vld [vmem:[%s0 + $0x78] sm:$0xf]
      %v312 = vld [vmem:[%s0 + $0x7c] sm:$0xf]
      %v313 = vld [vmem:[%s2] sm:$0xf]
      %v314 = vld [vmem:[%s2 + $0x4] sm:$0xf]
      %v347 = vunpack.c.l.b16 %v281
      %v348 = vunpack.c.l.b16 %v282
      %v349 = vunpack.c.l.b16 %v283
      %v350 = vunpack.c.l.b16 %v284
      %v351 = vunpack.c.l.b16 %v285
      %v352 = vunpack.c.l.b16 %v286
      %v353 = vunpack.c.l.b16 %v287
      %v354 = vunpack.c.l.b16 %v288
      %v355 = vunpack.c.l.b16 %v289
      %v356 = vunpack.c.l.b16 %v290
      %v357 = vunpack.c.l.b16 %v291
      %v358 = vunpack.c.l.b16 %v292
      %v359 = vunpack.c.l.b16 %v293
      %v360 = vunpack.c.l.b16 %v294
      %v361 = vunpack.c.l.b16 %v295
      %v362 = vunpack.c.l.b16 %v296
      %v363 = vunpack.c.l.b16 %v297
      %v364 = vunpack.c.l.b16 %v298
      %v365 = vunpack.c.l.b16 %v299
      %v366 = vunpack.c.l.b16 %v300
      %v367 = vunpack.c.l.b16 %v301
      %v368 = vunpack.c.l.b16 %v302
      %v369 = vunpack.c.l.b16 %v303
      %v370 = vunpack.c.l.b16 %v304
      %v371 = vunpack.c.l.b16 %v305
      %v372 = vunpack.c.l.b16 %v306
      %v373 = vunpack.c.l.b16 %v307
      %v374 = vunpack.c.l.b16 %v308
      %v375 = vunpack.c.l.b16 %v309
      %v376 = vunpack.c.l.b16 %v310
      %v377 = vunpack.c.l.b16 %v311
      %v378 = vunpack.c.l.b16 %v312
      %v379 = vpack.c.b16 %v348, %v347
      %v380 = vpack.c.b16 %v350, %v349
      %v381 = vpack.c.b16 %v352, %v351
      %v382 = vpack.c.b16 %v354, %v353
      %v383 = vpack.c.b16 %v356, %v355
      %v384 = vpack.c.b16 %v358, %v357
      %v385 = vpack.c.b16 %v360, %v359
      %v386 = vpack.c.b16 %v362, %v361
      %v387 = vpack.c.b16 %v364, %v363
      %v388 = vpack.c.b16 %v366, %v365
      %v389 = vpack.c.b16 %v368, %v367
      %v390 = vpack.c.b16 %v370, %v369
      %v391 = vpack.c.b16 %v372, %v371
      %v392 = vpack.c.b16 %v374, %v373
      %v393 = vpack.c.b16 %v376, %v375
      %v394 = vpack.c.b16 %v378, %v377
      %v397 = vunpack.c.l.b16 %v313
      %v398 = vunpack.c.l.b16 %v314
      %v399 = vpack.c.b16 %v398, %v397
      %vm401 = vcmask 130048
      %v403 = vsel %vm401, %v379, 0
      %v406 = vsel %vm401, %v380, 0
      %v409 = vsel %vm401, %v381, 0
      %v412 = vsel %vm401, %v382, 0
      %v415 = vsel %vm401, %v383, 0
      %v418 = vsel %vm401, %v384, 0
      %v421 = vsel %vm401, %v385, 0
      %v424 = vsel %vm401, %v386, 0
      %v427 = vsel %vm401, %v387, 0
      %v430 = vsel %vm401, %v388, 0
      %v433 = vsel %vm401, %v389, 0
      %v436 = vsel %vm401, %v390, 0
      %v439 = vsel %vm401, %v391, 0
      %v442 = vsel %vm401, %v392, 0
      %v445 = vsel %vm401, %v393, 0
      %v448 = vsel %vm401, %v394, 0
      %450 = vmatpush.bf16.msra.mxu0 0
      %451 = vmatpush.bf16.msra.mxu0 0
      %452 = vmatpush.bf16.msra.mxu0 0
      %453 = vmatpush.bf16.msra.mxu0 0
      %454 = vmatpush.bf16.msra.mxu0 0
      %455 = vmatpush.bf16.msra.mxu0 0
      %456 = vmatpush.bf16.msra.mxu0 0
      %457 = vmatpush.bf16.msra.mxu0 %v399
      %458 = vmatmul.bf16.gmra.mxu0 %v403
      %v459 = vpop.f32.mrf.mxu0
      %v460 = vadd.f32 0.0, %v459
      %v461 = vpop.f32.mrf.mxu0
      %v462 = vadd.f32 0.0, %v461
      %463 = vmatmul.bf16.gmra.mxu0 %v406
      %v464 = vpop.f32.mrf.mxu0
      %v465 = vadd.f32 0.0, %v464
      %v466 = vpop.f32.mrf.mxu0
      %v467 = vadd.f32 0.0, %v466
      %468 = vmatmul.bf16.gmra.mxu0 %v409
      %v469 = vpop.f32.mrf.mxu0
      %v470 = vadd.f32 0.0, %v469
      %v471 = vpop.f32.mrf.mxu0
      %v472 = vadd.f32 0.0, %v471
      %473 = vmatmul.bf16.gmra.mxu0 %v412
      %v474 = vpop.f32.mrf.mxu0
      %v475 = vadd.f32 0.0, %v474
      %v476 = vpop.f32.mrf.mxu0
      %v477 = vadd.f32 0.0, %v476
      %478 = vmatmul.bf16.gmra.mxu0 %v415
      %v479 = vpop.f32.mrf.mxu0
      %v480 = vadd.f32 0.0, %v479
      %v481 = vpop.f32.mrf.mxu0
      %v482 = vadd.f32 0.0, %v481
      %483 = vmatmul.bf16.gmra.mxu0 %v418
      %v484 = vpop.f32.mrf.mxu0
      %v485 = vadd.f32 0.0, %v484
      %v486 = vpop.f32.mrf.mxu0
      %v487 = vadd.f32 0.0, %v486
      %488 = vmatmul.bf16.gmra.mxu0 %v421
      %v489 = vpop.f32.mrf.mxu0
      %v490 = vadd.f32 0.0, %v489
      %v491 = vpop.f32.mrf.mxu0
      %v492 = vadd.f32 0.0, %v491
      %493 = vmatmul.bf16.gmra.mxu0 %v424
      %v494 = vpop.f32.mrf.mxu0
      %v495 = vadd.f32 0.0, %v494
      %v496 = vpop.f32.mrf.mxu0
      %v497 = vadd.f32 0.0, %v496
      %498 = vmatmul.bf16.gmra.mxu0 %v427
      %v499 = vpop.f32.mrf.mxu0
      %v500 = vadd.f32 0.0, %v499
      %v501 = vpop.f32.mrf.mxu0
      %v502 = vadd.f32 0.0, %v501
      %503 = vmatmul.bf16.gmra.mxu0 %v430
      %v504 = vpop.f32.mrf.mxu0
      %v505 = vadd.f32 0.0, %v504
      %v506 = vpop.f32.mrf.mxu0
      %v507 = vadd.f32 0.0, %v506
      %508 = vmatmul.bf16.gmra.mxu0 %v433
      %v509 = vpop.f32.mrf.mxu0
      %v510 = vadd.f32 0.0, %v509
      %v511 = vpop.f32.mrf.mxu0
      %v512 = vadd.f32 0.0, %v511
      %513 = vmatmul.bf16.gmra.mxu0 %v436
      %v514 = vpop.f32.mrf.mxu0
      %v515 = vadd.f32 0.0, %v514
      %v516 = vpop.f32.mrf.mxu0
      %v517 = vadd.f32 0.0, %v516
      %518 = vmatmul.bf16.gmra.mxu0 %v439
      %v519 = vpop.f32.mrf.mxu0
      %v520 = vadd.f32 0.0, %v519
      %v521 = vpop.f32.mrf.mxu0
      %v522 = vadd.f32 0.0, %v521
      %523 = vmatmul.bf16.gmra.mxu0 %v442
      %v524 = vpop.f32.mrf.mxu0
      %v525 = vadd.f32 0.0, %v524
      %v526 = vpop.f32.mrf.mxu0
      %v527 = vadd.f32 0.0, %v526
      %528 = vmatmul.bf16.gmra.mxu0 %v445
      %v529 = vpop.f32.mrf.mxu0
      %v530 = vadd.f32 0.0, %v529
      %v531 = vpop.f32.mrf.mxu0
      %v532 = vadd.f32 0.0, %v531
      %533 = vmatmul.bf16.gmra.mxu0 %v448
      %v534 = vpop.f32.mrf.mxu0
      %v535 = vadd.f32 0.0, %v534
      %v536 = vpop.f32.mrf.mxu0
      %v537 = vadd.f32 0.0, %v536
      %538 = vdwg.mxu0
      %v539 = vpack.c.bf16 %v460, %v460
      %v540 = vpack.c.bf16 %v462, %v462
      %v541 = vpack.c.bf16 %v465, %v465
      %v542 = vpack.c.bf16 %v467, %v467
      %v543 = vpack.c.bf16 %v470, %v470
      %v544 = vpack.c.bf16 %v472, %v472
      %v545 = vpack.c.bf16 %v475, %v475
      %v546 = vpack.c.bf16 %v477, %v477
      %v547 = vpack.c.bf16 %v480, %v480
      %v548 = vpack.c.bf16 %v482, %v482
      %v549 = vpack.c.bf16 %v485, %v485
      %v550 = vpack.c.bf16 %v487, %v487
      %v551 = vpack.c.bf16 %v490, %v490
      %v552 = vpack.c.bf16 %v492, %v492
      %v553 = vpack.c.bf16 %v495, %v495
      %v554 = vpack.c.bf16 %v497, %v497
      %v555 = vpack.c.bf16 %v500, %v500
      %v556 = vpack.c.bf16 %v502, %v502
      %v557 = vpack.c.bf16 %v505, %v505
      %v558 = vpack.c.bf16 %v507, %v507
      %v559 = vpack.c.bf16 %v510, %v510
      %v560 = vpack.c.bf16 %v512, %v512
      %v561 = vpack.c.bf16 %v515, %v515
      %v562 = vpack.c.bf16 %v517, %v517
      %v563 = vpack.c.bf16 %v520, %v520
      %v564 = vpack.c.bf16 %v522, %v522
      %v565 = vpack.c.bf16 %v525, %v525
      %v566 = vpack.c.bf16 %v527, %v527
      %v567 = vpack.c.bf16 %v530, %v530
      %v568 = vpack.c.bf16 %v532, %v532
      %v569 = vpack.c.bf16 %v535, %v535
      %v570 = vpack.c.bf16 %v537, %v537
      %v571 = vld [vmem:[%s266] sm:$0xff]
      %v572 = vld [vmem:[%s266 + $0x8] sm:$0xff]
      %v573 = vld [vmem:[%s266 + $0x10] sm:$0xff]
      %v574 = vld [vmem:[%s266 + $0x18] sm:$0xff]
      %v575 = vld [vmem:[%s266 + $0x20] sm:$0xff]
      %v576 = vld [vmem:[%s266 + $0x28] sm:$0xff]
      %v577 = vld [vmem:[%s266 + $0x30] sm:$0xff]
      %v578 = vld [vmem:[%s266 + $0x38] sm:$0xff]
      %v579 = vld [vmem:[%s266 + $0x40] sm:$0xff]
      %v580 = vld [vmem:[%s266 + $0x48] sm:$0xff]
      %v581 = vld [vmem:[%s266 + $0x50] sm:$0xff]
      %v582 = vld [vmem:[%s266 + $0x58] sm:$0xff]
      %v583 = vld [vmem:[%s266 + $0x60] sm:$0xff]
      %v584 = vld [vmem:[%s266 + $0x68] sm:$0xff]
      %v585 = vld [vmem:[%s266 + $0x70] sm:$0xff]
      %v586 = vld [vmem:[%s266 + $0x78] sm:$0xff]
      %v587 = vunpack.c.l.bf16 %v571
      %v588 = vunpack.c.h.bf16 %v571
      %v589 = vunpack.c.l.bf16 %v572
      %v590 = vunpack.c.h.bf16 %v572
      %v591 = vunpack.c.l.bf16 %v573
      %v592 = vunpack.c.h.bf16 %v573
      %v593 = vunpack.c.l.bf16 %v574
      %v594 = vunpack.c.h.bf16 %v574
      %v595 = vunpack.c.l.bf16 %v575
      %v596 = vunpack.c.h.bf16 %v575
      %v597 = vunpack.c.l.bf16 %v576
      %v598 = vunpack.c.h.bf16 %v576
      %v599 = vunpack.c.l.bf16 %v577
      %v600 = vunpack.c.h.bf16 %v577
      %v601 = vunpack.c.l.bf16 %v578
      %v602 = vunpack.c.h.bf16 %v578
      %v603 = vunpack.c.l.bf16 %v579
      %v604 = vunpack.c.h.bf16 %v579
      %v605 = vunpack.c.l.bf16 %v580
      %v606 = vunpack.c.h.bf16 %v580
      %v607 = vunpack.c.l.bf16 %v581
      %v608 = vunpack.c.h.bf16 %v581
      %v609 = vunpack.c.l.bf16 %v582
      %v610 = vunpack.c.h.bf16 %v582
      %v611 = vunpack.c.l.bf16 %v583
      %v612 = vunpack.c.h.bf16 %v583
      %v613 = vunpack.c.l.bf16 %v584
      %v614 = vunpack.c.h.bf16 %v584
      %v615 = vunpack.c.l.bf16 %v585
      %v616 = vunpack.c.h.bf16 %v585
      %v617 = vunpack.c.l.bf16 %v586
      %v618 = vunpack.c.h.bf16 %v586
      %vm619 = vcmp.le.f32.partialorder %v587, 0.0
      %vm620 = vcmp.le.f32.partialorder %v588, 0.0
      %vm621 = vcmp.le.f32.partialorder %v589, 0.0
      %vm622 = vcmp.le.f32.partialorder %v590, 0.0
      %vm623 = vcmp.le.f32.partialorder %v591, 0.0
      %vm624 = vcmp.le.f32.partialorder %v592, 0.0
      %vm625 = vcmp.le.f32.partialorder %v593, 0.0
      %vm626 = vcmp.le.f32.partialorder %v594, 0.0
      %vm627 = vcmp.le.f32.partialorder %v595, 0.0
      %vm628 = vcmp.le.f32.partialorder %v596, 0.0
      %vm629 = vcmp.le.f32.partialorder %v597, 0.0
      %vm630 = vcmp.le.f32.partialorder %v598, 0.0
      %vm631 = vcmp.le.f32.partialorder %v599, 0.0
      %vm632 = vcmp.le.f32.partialorder %v600, 0.0
      %vm633 = vcmp.le.f32.partialorder %v601, 0.0
      %vm634 = vcmp.le.f32.partialorder %v602, 0.0
      %vm635 = vcmp.le.f32.partialorder %v603, 0.0
      %vm636 = vcmp.le.f32.partialorder %v604, 0.0
      %vm637 = vcmp.le.f32.partialorder %v605, 0.0
      %vm638 = vcmp.le.f32.partialorder %v606, 0.0
      %vm639 = vcmp.le.f32.partialorder %v607, 0.0
      %vm640 = vcmp.le.f32.partialorder %v608, 0.0
      %vm641 = vcmp.le.f32.partialorder %v609, 0.0
      %vm642 = vcmp.le.f32.partialorder %v610, 0.0
      %vm643 = vcmp.le.f32.partialorder %v611, 0.0
      %vm644 = vcmp.le.f32.partialorder %v612, 0.0
      %vm645 = vcmp.le.f32.partialorder %v613, 0.0
      %vm646 = vcmp.le.f32.partialorder %v614, 0.0
      %vm647 = vcmp.le.f32.partialorder %v615, 0.0
      %vm648 = vcmp.le.f32.partialorder %v616, 0.0
      %vm649 = vcmp.le.f32.partialorder %v617, 0.0
      %vm650 = vcmp.le.f32.partialorder %v618, 0.0
      %v651 = vld [vmem:[%s3] sm:$0xf]
      %v652 = vld [vmem:[%s272] sm:$0xff]
      %v653 = vld [vmem:[%s272 + $0x8] sm:$0xff]
      %v654 = vld [vmem:[%s272 + $0x10] sm:$0xff]
      %v655 = vld [vmem:[%s272 + $0x18] sm:$0xff]
      %v656 = vld [vmem:[%s272 + $0x20] sm:$0xff]
      %v657 = vld [vmem:[%s272 + $0x28] sm:$0xff]
      %v658 = vld [vmem:[%s272 + $0x30] sm:$0xff]
      %v659 = vld [vmem:[%s272 + $0x38] sm:$0xff]
      %v660 = vld [vmem:[%s272 + $0x40] sm:$0xff]
      %v661 = vld [vmem:[%s272 + $0x48] sm:$0xff]
      %v662 = vld [vmem:[%s272 + $0x50] sm:$0xff]
      %v663 = vld [vmem:[%s272 + $0x58] sm:$0xff]
      %v664 = vld [vmem:[%s272 + $0x60] sm:$0xff]
      %v665 = vld [vmem:[%s272 + $0x68] sm:$0xff]
      %v666 = vld [vmem:[%s272 + $0x70] sm:$0xff]
      %v667 = vld [vmem:[%s272 + $0x78] sm:$0xff]
      %669 = vset.pattern.permute.xlu0 0
      %670 = vperm.xlu0 %669, %v652
      %v671 = vpop.permute.xlu0 %670
      %674 = vset.pattern.permute.xlu0 0
      %675 = vperm.xlu0 %674, %v653
      %v676 = vpop.permute.xlu0 %675
      %679 = vset.pattern.permute.xlu0 0
      %680 = vperm.xlu0 %679, %v654
      %v681 = vpop.permute.xlu0 %680
      %684 = vset.pattern.permute.xlu0 0
      %685 = vperm.xlu0 %684, %v655
      %v686 = vpop.permute.xlu0 %685
      %689 = vset.pattern.permute.xlu0 0
      %690 = vperm.xlu0 %689, %v656
      %v691 = vpop.permute.xlu0 %690
      %694 = vset.pattern.permute.xlu0 0
      %695 = vperm.xlu0 %694, %v657
      %v696 = vpop.permute.xlu0 %695
      %699 = vset.pattern.permute.xlu0 0
      %700 = vperm.xlu0 %699, %v658
      %v701 = vpop.permute.xlu0 %700
      %704 = vset.pattern.permute.xlu0 0
      %705 = vperm.xlu0 %704, %v659
      %v706 = vpop.permute.xlu0 %705
      %709 = vset.pattern.permute.xlu0 0
      %710 = vperm.xlu0 %709, %v660
      %v711 = vpop.permute.xlu0 %710
      %714 = vset.pattern.permute.xlu0 0
      %715 = vperm.xlu0 %714, %v661
      %v716 = vpop.permute.xlu0 %715
      %719 = vset.pattern.permute.xlu0 0
      %720 = vperm.xlu0 %719, %v662
      %v721 = vpop.permute.xlu0 %720
      %724 = vset.pattern.permute.xlu0 0
      %725 = vperm.xlu0 %724, %v663
      %v726 = vpop.permute.xlu0 %725
      %729 = vset.pattern.permute.xlu0 0
      %730 = vperm.xlu0 %729, %v664
      %v731 = vpop.permute.xlu0 %730
      %734 = vset.pattern.permute.xlu0 0
      %735 = vperm.xlu0 %734, %v665
      %v736 = vpop.permute.xlu0 %735
      %739 = vset.pattern.permute.xlu0 0
      %740 = vperm.xlu0 %739, %v666
      %v741 = vpop.permute.xlu0 %740
      %744 = vset.pattern.permute.xlu0 0
      %745 = vperm.xlu0 %744, %v667
      %v746 = vpop.permute.xlu0 %745
      %v749 = vperm.slane %v651, 0
      %v750 = vperm.slane %v651, 2
      %v753 = vperm.slane %v749, 0
      %v754 = vperm.slane %v750, 0
      %v755 = vadd.f32 %v671, %v753
      %v756 = vadd.f32 %v671, %v754
      %v757 = vadd.f32 %v676, %v753
      %v758 = vadd.f32 %v676, %v754
      %v759 = vadd.f32 %v681, %v753
      %v760 = vadd.f32 %v681, %v754
      %v761 = vadd.f32 %v686, %v753
      %v762 = vadd.f32 %v686, %v754
      %v763 = vadd.f32 %v691, %v753
      %v764 = vadd.f32 %v691, %v754
      %v765 = vadd.f32 %v696, %v753
      %v766 = vadd.f32 %v696, %v754
      %v767 = vadd.f32 %v701, %v753
      %v768 = vadd.f32 %v701, %v754
      %v769 = vadd.f32 %v706, %v753
      %v770 = vadd.f32 %v706, %v754
      %v771 = vadd.f32 %v711, %v753
      %v772 = vadd.f32 %v711, %v754
      %v773 = vadd.f32 %v716, %v753
      %v774 = vadd.f32 %v716, %v754
      %v775 = vadd.f32 %v721, %v753
      %v776 = vadd.f32 %v721, %v754
      %v777 = vadd.f32 %v726, %v753
      %v778 = vadd.f32 %v726, %v754
      %v779 = vadd.f32 %v731, %v753
      %v780 = vadd.f32 %v731, %v754
      %v781 = vadd.f32 %v736, %v753
      %v782 = vadd.f32 %v736, %v754
      %v783 = vadd.f32 %v741, %v753
      %v784 = vadd.f32 %v741, %v754
      %v785 = vadd.f32 %v746, %v753
      %v786 = vadd.f32 %v746, %v754
      %vm787 = vcmp.gt.f32.partialorder %v755, 0.0
      %vm788 = vcmp.gt.f32.partialorder %v756, 0.0
      %vm789 = vcmp.gt.f32.partialorder %v757, 0.0
      %vm790 = vcmp.gt.f32.partialorder %v758, 0.0
      %vm791 = vcmp.gt.f32.partialorder %v759, 0.0
      %vm792 = vcmp.gt.f32.partialorder %v760, 0.0
      %vm793 = vcmp.gt.f32.partialorder %v761, 0.0
      %vm794 = vcmp.gt.f32.partialorder %v762, 0.0
      %vm795 = vcmp.gt.f32.partialorder %v763, 0.0
      %vm796 = vcmp.gt.f32.partialorder %v764, 0.0
      %vm797 = vcmp.gt.f32.partialorder %v765, 0.0
      %vm798 = vcmp.gt.f32.partialorder %v766, 0.0
      %vm799 = vcmp.gt.f32.partialorder %v767, 0.0
      %vm800 = vcmp.gt.f32.partialorder %v768, 0.0
      %vm801 = vcmp.gt.f32.partialorder %v769, 0.0
      %vm802 = vcmp.gt.f32.partialorder %v770, 0.0
      %vm803 = vcmp.gt.f32.partialorder %v771, 0.0
      %vm804 = vcmp.gt.f32.partialorder %v772, 0.0
      %vm805 = vcmp.gt.f32.partialorder %v773, 0.0
      %vm806 = vcmp.gt.f32.partialorder %v774, 0.0
      %vm807 = vcmp.gt.f32.partialorder %v775, 0.0
      %vm808 = vcmp.gt.f32.partialorder %v776, 0.0
      %vm809 = vcmp.gt.f32.partialorder %v777, 0.0
      %vm810 = vcmp.gt.f32.partialorder %v778, 0.0
      %vm811 = vcmp.gt.f32.partialorder %v779, 0.0
      %vm812 = vcmp.gt.f32.partialorder %v780, 0.0
      %vm813 = vcmp.gt.f32.partialorder %v781, 0.0
      %vm814 = vcmp.gt.f32.partialorder %v782, 0.0
      %vm815 = vcmp.gt.f32.partialorder %v783, 0.0
      %vm816 = vcmp.gt.f32.partialorder %v784, 0.0
      %vm817 = vcmp.gt.f32.partialorder %v785, 0.0
      %vm818 = vcmp.gt.f32.partialorder %v786, 0.0
      %v819 = vmul.f32 %v755, 0.2
      %v820 = vmul.f32 %v756, 0.2
      %v821 = vmul.f32 %v757, 0.2
      %v822 = vmul.f32 %v758, 0.2
      %v823 = vmul.f32 %v759, 0.2
      %v824 = vmul.f32 %v760, 0.2
      %v825 = vmul.f32 %v761, 0.2
      %v826 = vmul.f32 %v762, 0.2
      %v827 = vmul.f32 %v763, 0.2
      %v828 = vmul.f32 %v764, 0.2
      %v829 = vmul.f32 %v765, 0.2
      %v830 = vmul.f32 %v766, 0.2
      %v831 = vmul.f32 %v767, 0.2
      %v832 = vmul.f32 %v768, 0.2
      %v833 = vmul.f32 %v769, 0.2
      %v834 = vmul.f32 %v770, 0.2
      %v835 = vmul.f32 %v771, 0.2
      %v836 = vmul.f32 %v772, 0.2
      %v837 = vmul.f32 %v773, 0.2
      %v838 = vmul.f32 %v774, 0.2
      %v839 = vmul.f32 %v775, 0.2
      %v840 = vmul.f32 %v776, 0.2
      %v841 = vmul.f32 %v777, 0.2
      %v842 = vmul.f32 %v778, 0.2
      %v843 = vmul.f32 %v779, 0.2
      %v844 = vmul.f32 %v780, 0.2
      %v845 = vmul.f32 %v781, 0.2
      %v846 = vmul.f32 %v782, 0.2
      %v847 = vmul.f32 %v783, 0.2
      %v848 = vmul.f32 %v784, 0.2
      %v849 = vmul.f32 %v785, 0.2
      %v850 = vmul.f32 %v786, 0.2
      %v851 = vsel %vm787, %v755, %v819
      %v852 = vsel %vm788, %v756, %v820
      %v853 = vsel %vm789, %v757, %v821
      %v854 = vsel %vm790, %v758, %v822
      %v855 = vsel %vm791, %v759, %v823
      %v856 = vsel %vm792, %v760, %v824
      %v857 = vsel %vm793, %v761, %v825
      %v858 = vsel %vm794, %v762, %v826
      %v859 = vsel %vm795, %v763, %v827
      %v860 = vsel %vm796, %v764, %v828
      %v861 = vsel %vm797, %v765, %v829
      %v862 = vsel %vm798, %v766, %v830
      %v863 = vsel %vm799, %v767, %v831
      %v864 = vsel %vm800, %v768, %v832
      %v865 = vsel %vm801, %v769, %v833
      %v866 = vsel %vm802, %v770, %v834
      %v867 = vsel %vm803, %v771, %v835
      %v868 = vsel %vm804, %v772, %v836
      %v869 = vsel %vm805, %v773, %v837
      %v870 = vsel %vm806, %v774, %v838
      %v871 = vsel %vm807, %v775, %v839
      %v872 = vsel %vm808, %v776, %v840
      %v873 = vsel %vm809, %v777, %v841
      %v874 = vsel %vm810, %v778, %v842
      %v875 = vsel %vm811, %v779, %v843
      %v876 = vsel %vm812, %v780, %v844
      %v877 = vsel %vm813, %v781, %v845
      %v878 = vsel %vm814, %v782, %v846
      %v879 = vsel %vm815, %v783, %v847
      %v880 = vsel %vm816, %v784, %v848
      %v881 = vsel %vm817, %v785, %v849
      %v882 = vsel %vm818, %v786, %v850
      %v883 = vsel %vm619, -1e+30, %v851
      %v884 = vsel %vm620, -1e+30, %v852
      %v885 = vsel %vm621, -1e+30, %v853
      %v886 = vsel %vm622, -1e+30, %v854
      %v887 = vsel %vm623, -1e+30, %v855
      %v888 = vsel %vm624, -1e+30, %v856
      %v889 = vsel %vm625, -1e+30, %v857
      %v890 = vsel %vm626, -1e+30, %v858
      %v891 = vsel %vm627, -1e+30, %v859
      %v892 = vsel %vm628, -1e+30, %v860
      %v893 = vsel %vm629, -1e+30, %v861
      %v894 = vsel %vm630, -1e+30, %v862
      %v895 = vsel %vm631, -1e+30, %v863
      %v896 = vsel %vm632, -1e+30, %v864
      %v897 = vsel %vm633, -1e+30, %v865
      %v898 = vsel %vm634, -1e+30, %v866
      %v899 = vsel %vm635, -1e+30, %v867
      %v900 = vsel %vm636, -1e+30, %v868
      %v901 = vsel %vm637, -1e+30, %v869
      %v902 = vsel %vm638, -1e+30, %v870
      %v903 = vsel %vm639, -1e+30, %v871
      %v904 = vsel %vm640, -1e+30, %v872
      %v905 = vsel %vm641, -1e+30, %v873
      %v906 = vsel %vm642, -1e+30, %v874
      %v907 = vsel %vm643, -1e+30, %v875
      %v908 = vsel %vm644, -1e+30, %v876
      %v909 = vsel %vm645, -1e+30, %v877
      %v910 = vsel %vm646, -1e+30, %v878
      %v911 = vsel %vm647, -1e+30, %v879
      %v912 = vsel %vm648, -1e+30, %v880
      %v913 = vsel %vm649, -1e+30, %v881
      %v914 = vsel %vm650, -1e+30, %v882
      %v915 = vmax.f32 %v883, %v884
      %916 = vmax.xlane.f32.xlu0 %v915
      %v917 = vpop.xlane.xlu0 %916
      %v918 = vmax.f32 %v885, %v886
      %919 = vmax.xlane.f32.xlu0 %v918
      %v920 = vpop.xlane.xlu0 %919
      %v921 = vmax.f32 %v887, %v888
      %922 = vmax.xlane.f32.xlu0 %v921
      %v923 = vpop.xlane.xlu0 %922
      %v924 = vmax.f32 %v889, %v890
      %925 = vmax.xlane.f32.xlu0 %v924
      %v926 = vpop.xlane.xlu0 %925
      %v927 = vmax.f32 %v891, %v892
      %928 = vmax.xlane.f32.xlu0 %v927
      %v929 = vpop.xlane.xlu0 %928
      %v930 = vmax.f32 %v893, %v894
      %931 = vmax.xlane.f32.xlu0 %v930
      %v932 = vpop.xlane.xlu0 %931
      %v933 = vmax.f32 %v895, %v896
      %934 = vmax.xlane.f32.xlu0 %v933
      %v935 = vpop.xlane.xlu0 %934
      %v936 = vmax.f32 %v897, %v898
      %937 = vmax.xlane.f32.xlu0 %v936
      %v938 = vpop.xlane.xlu0 %937
      %v939 = vmax.f32 %v899, %v900
      %940 = vmax.xlane.f32.xlu0 %v939
      %v941 = vpop.xlane.xlu0 %940
      %v942 = vmax.f32 %v901, %v902
      %943 = vmax.xlane.f32.xlu0 %v942
      %v944 = vpop.xlane.xlu0 %943
      %v945 = vmax.f32 %v903, %v904
      %946 = vmax.xlane.f32.xlu0 %v945
      %v947 = vpop.xlane.xlu0 %946
      %v948 = vmax.f32 %v905, %v906
      %949 = vmax.xlane.f32.xlu0 %v948
      %v950 = vpop.xlane.xlu0 %949
      %v951 = vmax.f32 %v907, %v908
      %952 = vmax.xlane.f32.xlu0 %v951
      %v953 = vpop.xlane.xlu0 %952
      %v954 = vmax.f32 %v909, %v910
      %955 = vmax.xlane.f32.xlu0 %v954
      %v956 = vpop.xlane.xlu0 %955
      %v957 = vmax.f32 %v911, %v912
      %958 = vmax.xlane.f32.xlu0 %v957
      %v959 = vpop.xlane.xlu0 %958
      %v960 = vmax.f32 %v913, %v914
      %961 = vmax.xlane.f32.xlu0 %v960
      %v962 = vpop.xlane.xlu0 %961
      %v963 = vsub.f32 %v883, %v917
      %v964 = vsub.f32 %v884, %v917
      %v965 = vsub.f32 %v885, %v920
      %v966 = vsub.f32 %v886, %v920
      %v967 = vsub.f32 %v887, %v923
      %v968 = vsub.f32 %v888, %v923
      %v969 = vsub.f32 %v889, %v926
      %v970 = vsub.f32 %v890, %v926
      %v971 = vsub.f32 %v891, %v929
      %v972 = vsub.f32 %v892, %v929
      %v973 = vsub.f32 %v893, %v932
      %v974 = vsub.f32 %v894, %v932
      %v975 = vsub.f32 %v895, %v935
      %v976 = vsub.f32 %v896, %v935
      %v977 = vsub.f32 %v897, %v938
      %v978 = vsub.f32 %v898, %v938
      %v979 = vsub.f32 %v899, %v941
      %v980 = vsub.f32 %v900, %v941
      %v981 = vsub.f32 %v901, %v944
      %v982 = vsub.f32 %v902, %v944
      %v983 = vsub.f32 %v903, %v947
      %v984 = vsub.f32 %v904, %v947
      %v985 = vsub.f32 %v905, %v950
      %v986 = vsub.f32 %v906, %v950
      %v987 = vsub.f32 %v907, %v953
      %v988 = vsub.f32 %v908, %v953
      %v989 = vsub.f32 %v909, %v956
      %v990 = vsub.f32 %v910, %v956
      %v991 = vsub.f32 %v911, %v959
      %v992 = vsub.f32 %v912, %v959
      %v993 = vsub.f32 %v913, %v962
      %v994 = vsub.f32 %v914, %v962
      %v995 = vmul.f32 %v963, 1.442695
      %v996 = vpow.pop %v995
      %v997 = vmul.f32 %v964, 1.442695
      %v998 = vpow.pop %v997
      %v999 = vmul.f32 %v965, 1.442695
      %v1000 = vpow.pop %v999
      %v1001 = vmul.f32 %v966, 1.442695
      %v1002 = vpow.pop %v1001
      %v1003 = vmul.f32 %v967, 1.442695
      %v1004 = vpow.pop %v1003
      %v1005 = vmul.f32 %v968, 1.442695
      %v1006 = vpow.pop %v1005
      %v1007 = vmul.f32 %v969, 1.442695
      %v1008 = vpow.pop %v1007
      %v1009 = vmul.f32 %v970, 1.442695
      %v1010 = vpow.pop %v1009
      %v1011 = vmul.f32 %v971, 1.442695
      %v1012 = vpow.pop %v1011
      %v1013 = vmul.f32 %v972, 1.442695
      %v1014 = vpow.pop %v1013
      %v1015 = vmul.f32 %v973, 1.442695
      %v1016 = vpow.pop %v1015
      %v1017 = vmul.f32 %v974, 1.442695
      %v1018 = vpow.pop %v1017
      %v1019 = vmul.f32 %v975, 1.442695
      %v1020 = vpow.pop %v1019
      %v1021 = vmul.f32 %v976, 1.442695
      %v1022 = vpow.pop %v1021
      %v1023 = vmul.f32 %v977, 1.442695
      %v1024 = vpow.pop %v1023
      %v1025 = vmul.f32 %v978, 1.442695
      %v1026 = vpow.pop %v1025
      %v1027 = vmul.f32 %v979, 1.442695
      %v1028 = vpow.pop %v1027
      %v1029 = vmul.f32 %v980, 1.442695
      %v1030 = vpow.pop %v1029
      %v1031 = vmul.f32 %v981, 1.442695
      %v1032 = vpow.pop %v1031
      %v1033 = vmul.f32 %v982, 1.442695
      %v1034 = vpow.pop %v1033
      %v1035 = vmul.f32 %v983, 1.442695
      %v1036 = vpow.pop %v1035
      %v1037 = vmul.f32 %v984, 1.442695
      %v1038 = vpow.pop %v1037
      %v1039 = vmul.f32 %v985, 1.442695
      %v1040 = vpow.pop %v1039
      %v1041 = vmul.f32 %v986, 1.442695
      %v1042 = vpow.pop %v1041
      %v1043 = vmul.f32 %v987, 1.442695
      %v1044 = vpow.pop %v1043
      %v1045 = vmul.f32 %v988, 1.442695
      %v1046 = vpow.pop %v1045
      %v1047 = vmul.f32 %v989, 1.442695
      %v1048 = vpow.pop %v1047
      %v1049 = vmul.f32 %v990, 1.442695
      %v1050 = vpow.pop %v1049
      %v1051 = vmul.f32 %v991, 1.442695
      %v1052 = vpow.pop %v1051
      %v1053 = vmul.f32 %v992, 1.442695
      %v1054 = vpow.pop %v1053
      %v1055 = vmul.f32 %v993, 1.442695
      %v1056 = vpow.pop %v1055
      %v1057 = vmul.f32 %v994, 1.442695
      %v1058 = vpow.pop %v1057
      %v1059 = vadd.f32 %v996, %v998
      %1060 = vadd.xlane.f32.xlu0 %v1059
      %v1061 = vpop.xlane.xlu0 %1060
      %v1062 = vadd.f32 %v1000, %v1002
      %1063 = vadd.xlane.f32.xlu0 %v1062
      %v1064 = vpop.xlane.xlu0 %1063
      %v1065 = vadd.f32 %v1004, %v1006
      %1066 = vadd.xlane.f32.xlu0 %v1065
      %v1067 = vpop.xlane.xlu0 %1066
      %v1068 = vadd.f32 %v1008, %v1010
      %1069 = vadd.xlane.f32.xlu0 %v1068
      %v1070 = vpop.xlane.xlu0 %1069
      %v1071 = vadd.f32 %v1012, %v1014
      %1072 = vadd.xlane.f32.xlu0 %v1071
      %v1073 = vpop.xlane.xlu0 %1072
      %v1074 = vadd.f32 %v1016, %v1018
      %1075 = vadd.xlane.f32.xlu0 %v1074
      %v1076 = vpop.xlane.xlu0 %1075
      %v1077 = vadd.f32 %v1020, %v1022
      %1078 = vadd.xlane.f32.xlu0 %v1077
      %v1079 = vpop.xlane.xlu0 %1078
      %v1080 = vadd.f32 %v1024, %v1026
      %1081 = vadd.xlane.f32.xlu0 %v1080
      %v1082 = vpop.xlane.xlu0 %1081
      %v1083 = vadd.f32 %v1028, %v1030
      %1084 = vadd.xlane.f32.xlu0 %v1083
      %v1085 = vpop.xlane.xlu0 %1084
      %v1086 = vadd.f32 %v1032, %v1034
      %1087 = vadd.xlane.f32.xlu0 %v1086
      %v1088 = vpop.xlane.xlu0 %1087
      %v1089 = vadd.f32 %v1036, %v1038
      %1090 = vadd.xlane.f32.xlu0 %v1089
      %v1091 = vpop.xlane.xlu0 %1090
      %v1092 = vadd.f32 %v1040, %v1042
      %1093 = vadd.xlane.f32.xlu0 %v1092
      %v1094 = vpop.xlane.xlu0 %1093
      %v1095 = vadd.f32 %v1044, %v1046
      %1096 = vadd.xlane.f32.xlu0 %v1095
      %v1097 = vpop.xlane.xlu0 %1096
      %v1098 = vadd.f32 %v1048, %v1050
      %1099 = vadd.xlane.f32.xlu0 %v1098
      %v1100 = vpop.xlane.xlu0 %1099
      %v1101 = vadd.f32 %v1052, %v1054
      %1102 = vadd.xlane.f32.xlu0 %v1101
      %v1103 = vpop.xlane.xlu0 %1102
      %v1104 = vadd.f32 %v1056, %v1058
      %1105 = vadd.xlane.f32.xlu0 %v1104
      %v1106 = vpop.xlane.xlu0 %1105
      %v1107 = vpack.c.bf16 %v1000, %v996
      %v1108 = vpack.c.bf16 %v1002, %v998
      %v1109 = vpack.c.bf16 %v1008, %v1004
      %v1110 = vpack.c.bf16 %v1010, %v1006
      %v1111 = vpack.c.bf16 %v1016, %v1012
      %v1112 = vpack.c.bf16 %v1018, %v1014
      %v1113 = vpack.c.bf16 %v1024, %v1020
      %v1114 = vpack.c.bf16 %v1026, %v1022
      %v1115 = vpack.c.bf16 %v1032, %v1028
      %v1116 = vpack.c.bf16 %v1034, %v1030
      %v1117 = vpack.c.bf16 %v1040, %v1036
      %v1118 = vpack.c.bf16 %v1042, %v1038
      %v1119 = vpack.c.bf16 %v1048, %v1044
      %v1120 = vpack.c.bf16 %v1050, %v1046
      %v1121 = vpack.c.bf16 %v1056, %v1052
      %v1122 = vpack.c.bf16 %v1058, %v1054
      %v1155 = vunpack.c.l.b16 %v539
      %v1156 = vunpack.c.l.b16 %v540
      %v1157 = vunpack.c.l.b16 %v541
      %v1158 = vunpack.c.l.b16 %v542
      %v1159 = vunpack.c.l.b16 %v543
      %v1160 = vunpack.c.l.b16 %v544
      %v1161 = vunpack.c.l.b16 %v545
      %v1162 = vunpack.c.l.b16 %v546
      %v1163 = vunpack.c.l.b16 %v547
      %v1164 = vunpack.c.l.b16 %v548
      %v1165 = vunpack.c.l.b16 %v549
      %v1166 = vunpack.c.l.b16 %v550
      %v1167 = vunpack.c.l.b16 %v551
      %v1168 = vunpack.c.l.b16 %v552
      %v1169 = vunpack.c.l.b16 %v553
      %v1170 = vunpack.c.l.b16 %v554
      %v1171 = vunpack.c.l.b16 %v555
      %v1172 = vunpack.c.l.b16 %v556
      %v1173 = vunpack.c.l.b16 %v557
      %v1174 = vunpack.c.l.b16 %v558
      %v1175 = vunpack.c.l.b16 %v559
      %v1176 = vunpack.c.l.b16 %v560
      %v1177 = vunpack.c.l.b16 %v561
      %v1178 = vunpack.c.l.b16 %v562
      %v1179 = vunpack.c.l.b16 %v563
      %v1180 = vunpack.c.l.b16 %v564
      %v1181 = vunpack.c.l.b16 %v565
      %v1182 = vunpack.c.l.b16 %v566
      %v1183 = vunpack.c.l.b16 %v567
      %v1184 = vunpack.c.l.b16 %v568
      %v1185 = vunpack.c.l.b16 %v569
      %v1186 = vunpack.c.l.b16 %v570
      %v1187 = vpack.c.b16 %v1156, %v1155
      %v1188 = vpack.c.b16 %v1158, %v1157
      %v1189 = vpack.c.b16 %v1160, %v1159
      %v1190 = vpack.c.b16 %v1162, %v1161
      %v1191 = vpack.c.b16 %v1164, %v1163
      %v1192 = vpack.c.b16 %v1166, %v1165
      %v1193 = vpack.c.b16 %v1168, %v1167
      %v1194 = vpack.c.b16 %v1170, %v1169
      %v1195 = vpack.c.b16 %v1172, %v1171
      %v1196 = vpack.c.b16 %v1174, %v1173
      %v1197 = vpack.c.b16 %v1176, %v1175
      %v1198 = vpack.c.b16 %v1178, %v1177
      %v1199 = vpack.c.b16 %v1180, %v1179
      %v1200 = vpack.c.b16 %v1182, %v1181
      %v1201 = vpack.c.b16 %v1184, %v1183
      %v1202 = vpack.c.b16 %v1186, %v1185
      %1219 = vmatpush.bf16.msra.mxu0 %v1194
      %1220 = vmatpush.bf16.msra.mxu0 %v1193
      %1221 = vmatpush.bf16.msra.mxu0 %v1192
      %1222 = vmatpush.bf16.msra.mxu0 %v1191
      %1223 = vmatpush.bf16.msra.mxu0 %v1190
      %1224 = vmatpush.bf16.msra.mxu0 %v1189
      %1225 = vmatpush.bf16.msra.mxu0 %v1188
      %1226 = vmatpush.bf16.msra.mxu0 %v1187
      %1227 = vmatmul.bf16.gmra.mxu0 %v1107
      %v1228 = vpop.f32.mrf.mxu0
      %v1229 = vadd.f32 0.0, %v1228
      %v1230 = vpop.f32.mrf.mxu0
      %v1231 = vadd.f32 0.0, %v1230
      %1232 = vmatmul.bf16.gmra.mxu0 %v1109
      %v1233 = vpop.f32.mrf.mxu0
      %v1234 = vadd.f32 0.0, %v1233
      %v1235 = vpop.f32.mrf.mxu0
      %v1236 = vadd.f32 0.0, %v1235
      %1237 = vmatmul.bf16.gmra.mxu0 %v1111
      %v1238 = vpop.f32.mrf.mxu0
      %v1239 = vadd.f32 0.0, %v1238
      %v1240 = vpop.f32.mrf.mxu0
      %v1241 = vadd.f32 0.0, %v1240
      %1242 = vmatmul.bf16.gmra.mxu0 %v1113
      %v1243 = vpop.f32.mrf.mxu0
      %v1244 = vadd.f32 0.0, %v1243
      %v1245 = vpop.f32.mrf.mxu0
      %v1246 = vadd.f32 0.0, %v1245
      %1247 = vmatmul.bf16.gmra.mxu0 %v1115
      %v1248 = vpop.f32.mrf.mxu0
      %v1249 = vadd.f32 0.0, %v1248
      %v1250 = vpop.f32.mrf.mxu0
      %v1251 = vadd.f32 0.0, %v1250
      %1252 = vmatmul.bf16.gmra.mxu0 %v1117
      %v1253 = vpop.f32.mrf.mxu0
      %v1254 = vadd.f32 0.0, %v1253
      %v1255 = vpop.f32.mrf.mxu0
      %v1256 = vadd.f32 0.0, %v1255
      %1257 = vmatmul.bf16.gmra.mxu0 %v1119
      %v1258 = vpop.f32.mrf.mxu0
      %v1259 = vadd.f32 0.0, %v1258
      %v1260 = vpop.f32.mrf.mxu0
      %v1261 = vadd.f32 0.0, %v1260
      %1262 = vmatmul.bf16.gmra.mxu0 %v1121
      %v1263 = vpop.f32.mrf.mxu0
      %v1264 = vadd.f32 0.0, %v1263
      %v1265 = vpop.f32.mrf.mxu0
      %v1266 = vadd.f32 0.0, %v1265
      %1267 = vdwg.mxu0
      %1268 = vmatpush.bf16.msra.mxu0 %v1202
      %1269 = vmatpush.bf16.msra.mxu0 %v1201
      %1270 = vmatpush.bf16.msra.mxu0 %v1200
      %1271 = vmatpush.bf16.msra.mxu0 %v1199
      %1272 = vmatpush.bf16.msra.mxu0 %v1198
      %1273 = vmatpush.bf16.msra.mxu0 %v1197
      %1274 = vmatpush.bf16.msra.mxu0 %v1196
      %1275 = vmatpush.bf16.msra.mxu0 %v1195
      %1276 = vmatmul.bf16.gmra.mxu0 %v1108
      %v1277 = vpop.f32.mrf.mxu0
      %v1278 = vadd.f32 %v1229, %v1277
      %v1279 = vpop.f32.mrf.mxu0
      %v1280 = vadd.f32 %v1231, %v1279
      %1281 = vmatmul.bf16.gmra.mxu0 %v1110
      %v1282 = vpop.f32.mrf.mxu0
      %v1283 = vadd.f32 %v1234, %v1282
      %v1284 = vpop.f32.mrf.mxu0
      %v1285 = vadd.f32 %v1236, %v1284
      %1286 = vmatmul.bf16.gmra.mxu0 %v1112
      %v1287 = vpop.f32.mrf.mxu0
      %v1288 = vadd.f32 %v1239, %v1287
      %v1289 = vpop.f32.mrf.mxu0
      %v1290 = vadd.f32 %v1241, %v1289
      %1291 = vmatmul.bf16.gmra.mxu0 %v1114
      %v1292 = vpop.f32.mrf.mxu0
      %v1293 = vadd.f32 %v1244, %v1292
      %v1294 = vpop.f32.mrf.mxu0
      %v1295 = vadd.f32 %v1246, %v1294
      %1296 = vmatmul.bf16.gmra.mxu0 %v1116
      %v1297 = vpop.f32.mrf.mxu0
      %v1298 = vadd.f32 %v1249, %v1297
      %v1299 = vpop.f32.mrf.mxu0
      %v1300 = vadd.f32 %v1251, %v1299
      %1301 = vmatmul.bf16.gmra.mxu0 %v1118
      %v1302 = vpop.f32.mrf.mxu0
      %v1303 = vadd.f32 %v1254, %v1302
      %v1304 = vpop.f32.mrf.mxu0
      %v1305 = vadd.f32 %v1256, %v1304
      %1306 = vmatmul.bf16.gmra.mxu0 %v1120
      %v1307 = vpop.f32.mrf.mxu0
      %v1308 = vadd.f32 %v1259, %v1307
      %v1309 = vpop.f32.mrf.mxu0
      %v1310 = vadd.f32 %v1261, %v1309
      %1311 = vmatmul.bf16.gmra.mxu0 %v1122
      %v1312 = vpop.f32.mrf.mxu0
      %v1313 = vadd.f32 %v1264, %v1312
      %v1314 = vpop.f32.mrf.mxu0
      %v1315 = vadd.f32 %v1266, %v1314
      %1316 = vdwg.mxu0
      %v1317 = vrcp.pop %v1061
      %v1318 = vrcp.pop %v1064
      %v1319 = vrcp.pop %v1067
      %v1320 = vrcp.pop %v1070
      %v1321 = vrcp.pop %v1073
      %v1322 = vrcp.pop %v1076
      %v1323 = vrcp.pop %v1079
      %v1324 = vrcp.pop %v1082
      %v1325 = vrcp.pop %v1085
      %v1326 = vrcp.pop %v1088
      %v1327 = vrcp.pop %v1091
      %v1328 = vrcp.pop %v1094
      %v1329 = vrcp.pop %v1097
      %v1330 = vrcp.pop %v1100
      %v1331 = vrcp.pop %v1103
      %v1332 = vrcp.pop %v1106
      %v1333 = vmul.f32 %v1278, %v1317
      %v1334 = vmul.f32 %v1280, %v1318
      %v1335 = vmul.f32 %v1283, %v1319
      %v1336 = vmul.f32 %v1285, %v1320
      %v1337 = vmul.f32 %v1288, %v1321
      %v1338 = vmul.f32 %v1290, %v1322
      %v1339 = vmul.f32 %v1293, %v1323
      %v1340 = vmul.f32 %v1295, %v1324
      %v1341 = vmul.f32 %v1298, %v1325
      %v1342 = vmul.f32 %v1300, %v1326
      %v1343 = vmul.f32 %v1303, %v1327
      %v1344 = vmul.f32 %v1305, %v1328
      %v1345 = vmul.f32 %v1308, %v1329
      %v1346 = vmul.f32 %v1310, %v1330
      %v1347 = vmul.f32 %v1313, %v1331
      %v1348 = vmul.f32 %v1315, %v1332
      %v1349 = vld [vmem:[%s5] sm:$0x1]
      %v1350 = vperm.slane %v1349, 0
      %v1351 = vadd.f32 %v1333, %v1350
      %v1352 = vadd.f32 %v1334, %v1350
      %v1353 = vadd.f32 %v1335, %v1350
      %v1354 = vadd.f32 %v1336, %v1350
      %v1355 = vadd.f32 %v1337, %v1350
      %v1356 = vadd.f32 %v1338, %v1350
      %v1357 = vadd.f32 %v1339, %v1350
      %v1358 = vadd.f32 %v1340, %v1350
      %v1359 = vadd.f32 %v1341, %v1350
      %v1360 = vadd.f32 %v1342, %v1350
      %v1361 = vadd.f32 %v1343, %v1350
      %v1362 = vadd.f32 %v1344, %v1350
      %v1363 = vadd.f32 %v1345, %v1350
      %v1364 = vadd.f32 %v1346, %v1350
      %v1365 = vadd.f32 %v1347, %v1350
      %v1366 = vadd.f32 %v1348, %v1350
      %1367 = vset.pattern.permute.xlu0 1
      %1368 = vperm.xlu0 %1367, %v652
      %v1369 = vpop.permute.xlu0 %1368
      %1371 = vset.pattern.permute.xlu0 1
      %1372 = vperm.xlu0 %1371, %v653
      %v1373 = vpop.permute.xlu0 %1372
      %1375 = vset.pattern.permute.xlu0 1
      %1376 = vperm.xlu0 %1375, %v654
      %v1377 = vpop.permute.xlu0 %1376
      %1379 = vset.pattern.permute.xlu0 1
      %1380 = vperm.xlu0 %1379, %v655
      %v1381 = vpop.permute.xlu0 %1380
      %1383 = vset.pattern.permute.xlu0 1
      %1384 = vperm.xlu0 %1383, %v656
      %v1385 = vpop.permute.xlu0 %1384
      %1387 = vset.pattern.permute.xlu0 1
      %1388 = vperm.xlu0 %1387, %v657
      %v1389 = vpop.permute.xlu0 %1388
      %1391 = vset.pattern.permute.xlu0 1
      %1392 = vperm.xlu0 %1391, %v658
      %v1393 = vpop.permute.xlu0 %1392
      %1395 = vset.pattern.permute.xlu0 1
      %1396 = vperm.xlu0 %1395, %v659
      %v1397 = vpop.permute.xlu0 %1396
      %1399 = vset.pattern.permute.xlu0 1
      %1400 = vperm.xlu0 %1399, %v660
      %v1401 = vpop.permute.xlu0 %1400
      %1403 = vset.pattern.permute.xlu0 1
      %1404 = vperm.xlu0 %1403, %v661
      %v1405 = vpop.permute.xlu0 %1404
      %1407 = vset.pattern.permute.xlu0 1
      %1408 = vperm.xlu0 %1407, %v662
      %v1409 = vpop.permute.xlu0 %1408
      %1411 = vset.pattern.permute.xlu0 1
      %1412 = vperm.xlu0 %1411, %v663
      %v1413 = vpop.permute.xlu0 %1412
      %1415 = vset.pattern.permute.xlu0 1
      %1416 = vperm.xlu0 %1415, %v664
      %v1417 = vpop.permute.xlu0 %1416
      %1419 = vset.pattern.permute.xlu0 1
      %1420 = vperm.xlu0 %1419, %v665
      %v1421 = vpop.permute.xlu0 %1420
      %1423 = vset.pattern.permute.xlu0 1
      %1424 = vperm.xlu0 %1423, %v666
      %v1425 = vpop.permute.xlu0 %1424
      %1427 = vset.pattern.permute.xlu0 1
      %1428 = vperm.xlu0 %1427, %v667
      %v1429 = vpop.permute.xlu0 %1428
      %v1431 = vperm.slane %v651, 1
      %v1432 = vperm.slane %v651, 3
      %v1435 = vperm.slane %v1431, 1
      %v1436 = vperm.slane %v1432, 1
      %v1437 = vadd.f32 %v1369, %v1435
      %v1438 = vadd.f32 %v1369, %v1436
      %v1439 = vadd.f32 %v1373, %v1435
      %v1440 = vadd.f32 %v1373, %v1436
      %v1441 = vadd.f32 %v1377, %v1435
      %v1442 = vadd.f32 %v1377, %v1436
      %v1443 = vadd.f32 %v1381, %v1435
      %v1444 = vadd.f32 %v1381, %v1436
      %v1445 = vadd.f32 %v1385, %v1435
      %v1446 = vadd.f32 %v1385, %v1436
      %v1447 = vadd.f32 %v1389, %v1435
      %v1448 = vadd.f32 %v1389, %v1436
      %v1449 = vadd.f32 %v1393, %v1435
      %v1450 = vadd.f32 %v1393, %v1436
      %v1451 = vadd.f32 %v1397, %v1435
      %v1452 = vadd.f32 %v1397, %v1436
      %v1453 = vadd.f32 %v1401, %v1435
      %v1454 = vadd.f32 %v1401, %v1436
      %v1455 = vadd.f32 %v1405, %v1435
      %v1456 = vadd.f32 %v1405, %v1436
      %v1457 = vadd.f32 %v1409, %v1435
      %v1458 = vadd.f32 %v1409, %v1436
      %v1459 = vadd.f32 %v1413, %v1435
      %v1460 = vadd.f32 %v1413, %v1436
      %v1461 = vadd.f32 %v1417, %v1435
      %v1462 = vadd.f32 %v1417, %v1436
      %v1463 = vadd.f32 %v1421, %v1435
      %v1464 = vadd.f32 %v1421, %v1436
      %v1465 = vadd.f32 %v1425, %v1435
      %v1466 = vadd.f32 %v1425, %v1436
      %v1467 = vadd.f32 %v1429, %v1435
      %v1468 = vadd.f32 %v1429, %v1436
      %vm1469 = vcmp.gt.f32.partialorder %v1437, 0.0
      %vm1470 = vcmp.gt.f32.partialorder %v1438, 0.0
      %vm1471 = vcmp.gt.f32.partialorder %v1439, 0.0
      %vm1472 = vcmp.gt.f32.partialorder %v1440, 0.0
      %vm1473 = vcmp.gt.f32.partialorder %v1441, 0.0
      %vm1474 = vcmp.gt.f32.partialorder %v1442, 0.0
      %vm1475 = vcmp.gt.f32.partialorder %v1443, 0.0
      %vm1476 = vcmp.gt.f32.partialorder %v1444, 0.0
      %vm1477 = vcmp.gt.f32.partialorder %v1445, 0.0
      %vm1478 = vcmp.gt.f32.partialorder %v1446, 0.0
      %vm1479 = vcmp.gt.f32.partialorder %v1447, 0.0
      %vm1480 = vcmp.gt.f32.partialorder %v1448, 0.0
      %vm1481 = vcmp.gt.f32.partialorder %v1449, 0.0
      %vm1482 = vcmp.gt.f32.partialorder %v1450, 0.0
      %vm1483 = vcmp.gt.f32.partialorder %v1451, 0.0
      %vm1484 = vcmp.gt.f32.partialorder %v1452, 0.0
      %vm1485 = vcmp.gt.f32.partialorder %v1453, 0.0
      %vm1486 = vcmp.gt.f32.partialorder %v1454, 0.0
      %vm1487 = vcmp.gt.f32.partialorder %v1455, 0.0
      %vm1488 = vcmp.gt.f32.partialorder %v1456, 0.0
      %vm1489 = vcmp.gt.f32.partialorder %v1457, 0.0
      %vm1490 = vcmp.gt.f32.partialorder %v1458, 0.0
      %vm1491 = vcmp.gt.f32.partialorder %v1459, 0.0
      %vm1492 = vcmp.gt.f32.partialorder %v1460, 0.0
      %vm1493 = vcmp.gt.f32.partialorder %v1461, 0.0
      %vm1494 = vcmp.gt.f32.partialorder %v1462, 0.0
      %vm1495 = vcmp.gt.f32.partialorder %v1463, 0.0
      %vm1496 = vcmp.gt.f32.partialorder %v1464, 0.0
      %vm1497 = vcmp.gt.f32.partialorder %v1465, 0.0
      %vm1498 = vcmp.gt.f32.partialorder %v1466, 0.0
      %vm1499 = vcmp.gt.f32.partialorder %v1467, 0.0
      %vm1500 = vcmp.gt.f32.partialorder %v1468, 0.0
      %v1501 = vmul.f32 %v1437, 0.2
      %v1502 = vmul.f32 %v1438, 0.2
      %v1503 = vmul.f32 %v1439, 0.2
      %v1504 = vmul.f32 %v1440, 0.2
      %v1505 = vmul.f32 %v1441, 0.2
      %v1506 = vmul.f32 %v1442, 0.2
      %v1507 = vmul.f32 %v1443, 0.2
      %v1508 = vmul.f32 %v1444, 0.2
      %v1509 = vmul.f32 %v1445, 0.2
      %v1510 = vmul.f32 %v1446, 0.2
      %v1511 = vmul.f32 %v1447, 0.2
      %v1512 = vmul.f32 %v1448, 0.2
      %v1513 = vmul.f32 %v1449, 0.2
      %v1514 = vmul.f32 %v1450, 0.2
      %v1515 = vmul.f32 %v1451, 0.2
      %v1516 = vmul.f32 %v1452, 0.2
      %v1517 = vmul.f32 %v1453, 0.2
      %v1518 = vmul.f32 %v1454, 0.2
      %v1519 = vmul.f32 %v1455, 0.2
      %v1520 = vmul.f32 %v1456, 0.2
      %v1521 = vmul.f32 %v1457, 0.2
      %v1522 = vmul.f32 %v1458, 0.2
      %v1523 = vmul.f32 %v1459, 0.2
      %v1524 = vmul.f32 %v1460, 0.2
      %v1525 = vmul.f32 %v1461, 0.2
      %v1526 = vmul.f32 %v1462, 0.2
      %v1527 = vmul.f32 %v1463, 0.2
      %v1528 = vmul.f32 %v1464, 0.2
      %v1529 = vmul.f32 %v1465, 0.2
      %v1530 = vmul.f32 %v1466, 0.2
      %v1531 = vmul.f32 %v1467, 0.2
      %v1532 = vmul.f32 %v1468, 0.2
      %v1533 = vsel %vm1469, %v1437, %v1501
      %v1534 = vsel %vm1470, %v1438, %v1502
      %v1535 = vsel %vm1471, %v1439, %v1503
      %v1536 = vsel %vm1472, %v1440, %v1504
      %v1537 = vsel %vm1473, %v1441, %v1505
      %v1538 = vsel %vm1474, %v1442, %v1506
      %v1539 = vsel %vm1475, %v1443, %v1507
      %v1540 = vsel %vm1476, %v1444, %v1508
      %v1541 = vsel %vm1477, %v1445, %v1509
      %v1542 = vsel %vm1478, %v1446, %v1510
      %v1543 = vsel %vm1479, %v1447, %v1511
      %v1544 = vsel %vm1480, %v1448, %v1512
      %v1545 = vsel %vm1481, %v1449, %v1513
      %v1546 = vsel %vm1482, %v1450, %v1514
      %v1547 = vsel %vm1483, %v1451, %v1515
      %v1548 = vsel %vm1484, %v1452, %v1516
      %v1549 = vsel %vm1485, %v1453, %v1517
      %v1550 = vsel %vm1486, %v1454, %v1518
      %v1551 = vsel %vm1487, %v1455, %v1519
      %v1552 = vsel %vm1488, %v1456, %v1520
      %v1553 = vsel %vm1489, %v1457, %v1521
      %v1554 = vsel %vm1490, %v1458, %v1522
      %v1555 = vsel %vm1491, %v1459, %v1523
      %v1556 = vsel %vm1492, %v1460, %v1524
      %v1557 = vsel %vm1493, %v1461, %v1525
      %v1558 = vsel %vm1494, %v1462, %v1526
      %v1559 = vsel %vm1495, %v1463, %v1527
      %v1560 = vsel %vm1496, %v1464, %v1528
      %v1561 = vsel %vm1497, %v1465, %v1529
      %v1562 = vsel %vm1498, %v1466, %v1530
      %v1563 = vsel %vm1499, %v1467, %v1531
      %v1564 = vsel %vm1500, %v1468, %v1532
      %v1565 = vsel %vm619, -1e+30, %v1533
      %v1566 = vsel %vm620, -1e+30, %v1534
      %v1567 = vsel %vm621, -1e+30, %v1535
      %v1568 = vsel %vm622, -1e+30, %v1536
      %v1569 = vsel %vm623, -1e+30, %v1537
      %v1570 = vsel %vm624, -1e+30, %v1538
      %v1571 = vsel %vm625, -1e+30, %v1539
      %v1572 = vsel %vm626, -1e+30, %v1540
      %v1573 = vsel %vm627, -1e+30, %v1541
      %v1574 = vsel %vm628, -1e+30, %v1542
      %v1575 = vsel %vm629, -1e+30, %v1543
      %v1576 = vsel %vm630, -1e+30, %v1544
      %v1577 = vsel %vm631, -1e+30, %v1545
      %v1578 = vsel %vm632, -1e+30, %v1546
      %v1579 = vsel %vm633, -1e+30, %v1547
      %v1580 = vsel %vm634, -1e+30, %v1548
      %v1581 = vsel %vm635, -1e+30, %v1549
      %v1582 = vsel %vm636, -1e+30, %v1550
      %v1583 = vsel %vm637, -1e+30, %v1551
      %v1584 = vsel %vm638, -1e+30, %v1552
      %v1585 = vsel %vm639, -1e+30, %v1553
      %v1586 = vsel %vm640, -1e+30, %v1554
      %v1587 = vsel %vm641, -1e+30, %v1555
      %v1588 = vsel %vm642, -1e+30, %v1556
      %v1589 = vsel %vm643, -1e+30, %v1557
      %v1590 = vsel %vm644, -1e+30, %v1558
      %v1591 = vsel %vm645, -1e+30, %v1559
      %v1592 = vsel %vm646, -1e+30, %v1560
      %v1593 = vsel %vm647, -1e+30, %v1561
      %v1594 = vsel %vm648, -1e+30, %v1562
      %v1595 = vsel %vm649, -1e+30, %v1563
      %v1596 = vsel %vm650, -1e+30, %v1564
      %v1597 = vmax.f32 %v1565, %v1566
      %1598 = vmax.xlane.f32.xlu0 %v1597
      %v1599 = vpop.xlane.xlu0 %1598
      %v1600 = vmax.f32 %v1567, %v1568
      %1601 = vmax.xlane.f32.xlu0 %v1600
      %v1602 = vpop.xlane.xlu0 %1601
      %v1603 = vmax.f32 %v1569, %v1570
      %1604 = vmax.xlane.f32.xlu0 %v1603
      %v1605 = vpop.xlane.xlu0 %1604
      %v1606 = vmax.f32 %v1571, %v1572
      %1607 = vmax.xlane.f32.xlu0 %v1606
      %v1608 = vpop.xlane.xlu0 %1607
      %v1609 = vmax.f32 %v1573, %v1574
      %1610 = vmax.xlane.f32.xlu0 %v1609
      %v1611 = vpop.xlane.xlu0 %1610
      %v1612 = vmax.f32 %v1575, %v1576
      %1613 = vmax.xlane.f32.xlu0 %v1612
      %v1614 = vpop.xlane.xlu0 %1613
      %v1615 = vmax.f32 %v1577, %v1578
      %1616 = vmax.xlane.f32.xlu0 %v1615
      %v1617 = vpop.xlane.xlu0 %1616
      %v1618 = vmax.f32 %v1579, %v1580
      %1619 = vmax.xlane.f32.xlu0 %v1618
      %v1620 = vpop.xlane.xlu0 %1619
      %v1621 = vmax.f32 %v1581, %v1582
      %1622 = vmax.xlane.f32.xlu0 %v1621
      %v1623 = vpop.xlane.xlu0 %1622
      %v1624 = vmax.f32 %v1583, %v1584
      %1625 = vmax.xlane.f32.xlu0 %v1624
      %v1626 = vpop.xlane.xlu0 %1625
      %v1627 = vmax.f32 %v1585, %v1586
      %1628 = vmax.xlane.f32.xlu0 %v1627
      %v1629 = vpop.xlane.xlu0 %1628
      %v1630 = vmax.f32 %v1587, %v1588
      %1631 = vmax.xlane.f32.xlu0 %v1630
      %v1632 = vpop.xlane.xlu0 %1631
      %v1633 = vmax.f32 %v1589, %v1590
      %1634 = vmax.xlane.f32.xlu0 %v1633
      %v1635 = vpop.xlane.xlu0 %1634
      %v1636 = vmax.f32 %v1591, %v1592
      %1637 = vmax.xlane.f32.xlu0 %v1636
      %v1638 = vpop.xlane.xlu0 %1637
      %v1639 = vmax.f32 %v1593, %v1594
      %1640 = vmax.xlane.f32.xlu0 %v1639
      %v1641 = vpop.xlane.xlu0 %1640
      %v1642 = vmax.f32 %v1595, %v1596
      %1643 = vmax.xlane.f32.xlu0 %v1642
      %v1644 = vpop.xlane.xlu0 %1643
      %v1645 = vsub.f32 %v1565, %v1599
      %v1646 = vsub.f32 %v1566, %v1599
      %v1647 = vsub.f32 %v1567, %v1602
      %v1648 = vsub.f32 %v1568, %v1602
      %v1649 = vsub.f32 %v1569, %v1605
      %v1650 = vsub.f32 %v1570, %v1605
      %v1651 = vsub.f32 %v1571, %v1608
      %v1652 = vsub.f32 %v1572, %v1608
      %v1653 = vsub.f32 %v1573, %v1611
      %v1654 = vsub.f32 %v1574, %v1611
      %v1655 = vsub.f32 %v1575, %v1614
      %v1656 = vsub.f32 %v1576, %v1614
      %v1657 = vsub.f32 %v1577, %v1617
      %v1658 = vsub.f32 %v1578, %v1617
      %v1659 = vsub.f32 %v1579, %v1620
      %v1660 = vsub.f32 %v1580, %v1620
      %v1661 = vsub.f32 %v1581, %v1623
      %v1662 = vsub.f32 %v1582, %v1623
      %v1663 = vsub.f32 %v1583, %v1626
      %v1664 = vsub.f32 %v1584, %v1626
      %v1665 = vsub.f32 %v1585, %v1629
      %v1666 = vsub.f32 %v1586, %v1629
      %v1667 = vsub.f32 %v1587, %v1632
      %v1668 = vsub.f32 %v1588, %v1632
      %v1669 = vsub.f32 %v1589, %v1635
      %v1670 = vsub.f32 %v1590, %v1635
      %v1671 = vsub.f32 %v1591, %v1638
      %v1672 = vsub.f32 %v1592, %v1638
      %v1673 = vsub.f32 %v1593, %v1641
      %v1674 = vsub.f32 %v1594, %v1641
      %v1675 = vsub.f32 %v1595, %v1644
      %v1676 = vsub.f32 %v1596, %v1644
      %v1677 = vmul.f32 %v1645, 1.442695
      %v1678 = vpow.pop %v1677
      %v1679 = vmul.f32 %v1646, 1.442695
      %v1680 = vpow.pop %v1679
      %v1681 = vmul.f32 %v1647, 1.442695
      %v1682 = vpow.pop %v1681
      %v1683 = vmul.f32 %v1648, 1.442695
      %v1684 = vpow.pop %v1683
      %v1685 = vmul.f32 %v1649, 1.442695
      %v1686 = vpow.pop %v1685
      %v1687 = vmul.f32 %v1650, 1.442695
      %v1688 = vpow.pop %v1687
      %v1689 = vmul.f32 %v1651, 1.442695
      %v1690 = vpow.pop %v1689
      %v1691 = vmul.f32 %v1652, 1.442695
      %v1692 = vpow.pop %v1691
      %v1693 = vmul.f32 %v1653, 1.442695
      %v1694 = vpow.pop %v1693
      %v1695 = vmul.f32 %v1654, 1.442695
      %v1696 = vpow.pop %v1695
      %v1697 = vmul.f32 %v1655, 1.442695
      %v1698 = vpow.pop %v1697
      %v1699 = vmul.f32 %v1656, 1.442695
      %v1700 = vpow.pop %v1699
      %v1701 = vmul.f32 %v1657, 1.442695
      %v1702 = vpow.pop %v1701
      %v1703 = vmul.f32 %v1658, 1.442695
      %v1704 = vpow.pop %v1703
      %v1705 = vmul.f32 %v1659, 1.442695
      %v1706 = vpow.pop %v1705
      %v1707 = vmul.f32 %v1660, 1.442695
      %v1708 = vpow.pop %v1707
      %v1709 = vmul.f32 %v1661, 1.442695
      %v1710 = vpow.pop %v1709
      %v1711 = vmul.f32 %v1662, 1.442695
      %v1712 = vpow.pop %v1711
      %v1713 = vmul.f32 %v1663, 1.442695
      %v1714 = vpow.pop %v1713
      %v1715 = vmul.f32 %v1664, 1.442695
      %v1716 = vpow.pop %v1715
      %v1717 = vmul.f32 %v1665, 1.442695
      %v1718 = vpow.pop %v1717
      %v1719 = vmul.f32 %v1666, 1.442695
      %v1720 = vpow.pop %v1719
      %v1721 = vmul.f32 %v1667, 1.442695
      %v1722 = vpow.pop %v1721
      %v1723 = vmul.f32 %v1668, 1.442695
      %v1724 = vpow.pop %v1723
      %v1725 = vmul.f32 %v1669, 1.442695
      %v1726 = vpow.pop %v1725
      %v1727 = vmul.f32 %v1670, 1.442695
      %v1728 = vpow.pop %v1727
      %v1729 = vmul.f32 %v1671, 1.442695
      %v1730 = vpow.pop %v1729
      %v1731 = vmul.f32 %v1672, 1.442695
      %v1732 = vpow.pop %v1731
      %v1733 = vmul.f32 %v1673, 1.442695
      %v1734 = vpow.pop %v1733
      %v1735 = vmul.f32 %v1674, 1.442695
      %v1736 = vpow.pop %v1735
      %v1737 = vmul.f32 %v1675, 1.442695
      %v1738 = vpow.pop %v1737
      %v1739 = vmul.f32 %v1676, 1.442695
      %v1740 = vpow.pop %v1739
      %v1741 = vadd.f32 %v1678, %v1680
      %1742 = vadd.xlane.f32.xlu0 %v1741
      %v1743 = vpop.xlane.xlu0 %1742
      %v1744 = vadd.f32 %v1682, %v1684
      %1745 = vadd.xlane.f32.xlu0 %v1744
      %v1746 = vpop.xlane.xlu0 %1745
      %v1747 = vadd.f32 %v1686, %v1688
      %1748 = vadd.xlane.f32.xlu0 %v1747
      %v1749 = vpop.xlane.xlu0 %1748
      %v1750 = vadd.f32 %v1690, %v1692
      %1751 = vadd.xlane.f32.xlu0 %v1750
      %v1752 = vpop.xlane.xlu0 %1751
      %v1753 = vadd.f32 %v1694, %v1696
      %1754 = vadd.xlane.f32.xlu0 %v1753
      %v1755 = vpop.xlane.xlu0 %1754
      %v1756 = vadd.f32 %v1698, %v1700
      %1757 = vadd.xlane.f32.xlu0 %v1756
      %v1758 = vpop.xlane.xlu0 %1757
      %v1759 = vadd.f32 %v1702, %v1704
      %1760 = vadd.xlane.f32.xlu0 %v1759
      %v1761 = vpop.xlane.xlu0 %1760
      %v1762 = vadd.f32 %v1706, %v1708
      %1763 = vadd.xlane.f32.xlu0 %v1762
      %v1764 = vpop.xlane.xlu0 %1763
      %v1765 = vadd.f32 %v1710, %v1712
      %1766 = vadd.xlane.f32.xlu0 %v1765
      %v1767 = vpop.xlane.xlu0 %1766
      %v1768 = vadd.f32 %v1714, %v1716
      %1769 = vadd.xlane.f32.xlu0 %v1768
      %v1770 = vpop.xlane.xlu0 %1769
      %v1771 = vadd.f32 %v1718, %v1720
      %1772 = vadd.xlane.f32.xlu0 %v1771
      %v1773 = vpop.xlane.xlu0 %1772
      %v1774 = vadd.f32 %v1722, %v1724
      %1775 = vadd.xlane.f32.xlu0 %v1774
      %v1776 = vpop.xlane.xlu0 %1775
      %v1777 = vadd.f32 %v1726, %v1728
      %1778 = vadd.xlane.f32.xlu0 %v1777
      %v1779 = vpop.xlane.xlu0 %1778
      %v1780 = vadd.f32 %v1730, %v1732
      %1781 = vadd.xlane.f32.xlu0 %v1780
      %v1782 = vpop.xlane.xlu0 %1781
      %v1783 = vadd.f32 %v1734, %v1736
      %1784 = vadd.xlane.f32.xlu0 %v1783
      %v1785 = vpop.xlane.xlu0 %1784
      %v1786 = vadd.f32 %v1738, %v1740
      %1787 = vadd.xlane.f32.xlu0 %v1786
      %v1788 = vpop.xlane.xlu0 %1787
      %v1789 = vpack.c.bf16 %v1682, %v1678
      %v1790 = vpack.c.bf16 %v1684, %v1680
      %v1791 = vpack.c.bf16 %v1690, %v1686
      %v1792 = vpack.c.bf16 %v1692, %v1688
      %v1793 = vpack.c.bf16 %v1698, %v1694
      %v1794 = vpack.c.bf16 %v1700, %v1696
      %v1795 = vpack.c.bf16 %v1706, %v1702
      %v1796 = vpack.c.bf16 %v1708, %v1704
      %v1797 = vpack.c.bf16 %v1714, %v1710
      %v1798 = vpack.c.bf16 %v1716, %v1712
      %v1799 = vpack.c.bf16 %v1722, %v1718
      %v1800 = vpack.c.bf16 %v1724, %v1720
      %v1801 = vpack.c.bf16 %v1730, %v1726
      %v1802 = vpack.c.bf16 %v1732, %v1728
      %v1803 = vpack.c.bf16 %v1738, %v1734
      %v1804 = vpack.c.bf16 %v1740, %v1736
      %1805 = vrot.lane.b32.xlu0 %v1187, 112
      %v1806 = vpop.permute.xlu0 %1805
      %1807 = vrot.lane.b32.xlu0 %v1188, 112
      %v1808 = vpop.permute.xlu0 %1807
      %1809 = vrot.lane.b32.xlu0 %v1189, 112
      %v1810 = vpop.permute.xlu0 %1809
      %1811 = vrot.lane.b32.xlu0 %v1190, 112
      %v1812 = vpop.permute.xlu0 %1811
      %1813 = vrot.lane.b32.xlu0 %v1191, 112
      %v1814 = vpop.permute.xlu0 %1813
      %1815 = vrot.lane.b32.xlu0 %v1192, 112
      %v1816 = vpop.permute.xlu0 %1815
      %1817 = vrot.lane.b32.xlu0 %v1193, 112
      %v1818 = vpop.permute.xlu0 %1817
      %1819 = vrot.lane.b32.xlu0 %v1194, 112
      %v1820 = vpop.permute.xlu0 %1819
      %1821 = vrot.lane.b32.xlu0 %v1195, 112
      %v1822 = vpop.permute.xlu0 %1821
      %1823 = vrot.lane.b32.xlu0 %v1196, 112
      %v1824 = vpop.permute.xlu0 %1823
      %1825 = vrot.lane.b32.xlu0 %v1197, 112
      %v1826 = vpop.permute.xlu0 %1825
      %1827 = vrot.lane.b32.xlu0 %v1198, 112
      %v1828 = vpop.permute.xlu0 %1827
      %1829 = vrot.lane.b32.xlu0 %v1199, 112
      %v1830 = vpop.permute.xlu0 %1829
      %1831 = vrot.lane.b32.xlu0 %v1200, 112
      %v1832 = vpop.permute.xlu0 %1831
      %1833 = vrot.lane.b32.xlu0 %v1201, 112
      %v1834 = vpop.permute.xlu0 %1833
      %1835 = vrot.lane.b32.xlu0 %v1202, 112
      %v1836 = vpop.permute.xlu0 %1835
      %1853 = vmatpush.bf16.msra.mxu0 %v1820
      %1854 = vmatpush.bf16.msra.mxu0 %v1818
      %1855 = vmatpush.bf16.msra.mxu0 %v1816
      %1856 = vmatpush.bf16.msra.mxu0 %v1814
      %1857 = vmatpush.bf16.msra.mxu0 %v1812
      %1858 = vmatpush.bf16.msra.mxu0 %v1810
      %1859 = vmatpush.bf16.msra.mxu0 %v1808
      %1860 = vmatpush.bf16.msra.mxu0 %v1806
      %1861 = vmatmul.bf16.gmra.mxu0 %v1789
      %v1862 = vpop.f32.mrf.mxu0
      %v1863 = vadd.f32 0.0, %v1862
      %v1864 = vpop.f32.mrf.mxu0
      %v1865 = vadd.f32 0.0, %v1864
      %1866 = vmatmul.bf16.gmra.mxu0 %v1791
      %v1867 = vpop.f32.mrf.mxu0
      %v1868 = vadd.f32 0.0, %v1867
      %v1869 = vpop.f32.mrf.mxu0
      %v1870 = vadd.f32 0.0, %v1869
      %1871 = vmatmul.bf16.gmra.mxu0 %v1793
      %v1872 = vpop.f32.mrf.mxu0
      %v1873 = vadd.f32 0.0, %v1872
      %v1874 = vpop.f32.mrf.mxu0
      %v1875 = vadd.f32 0.0, %v1874
      %1876 = vmatmul.bf16.gmra.mxu0 %v1795
      %v1877 = vpop.f32.mrf.mxu0
      %v1878 = vadd.f32 0.0, %v1877
      %v1879 = vpop.f32.mrf.mxu0
      %v1880 = vadd.f32 0.0, %v1879
      %1881 = vmatmul.bf16.gmra.mxu0 %v1797
      %v1882 = vpop.f32.mrf.mxu0
      %v1883 = vadd.f32 0.0, %v1882
      %v1884 = vpop.f32.mrf.mxu0
      %v1885 = vadd.f32 0.0, %v1884
      %1886 = vmatmul.bf16.gmra.mxu0 %v1799
      %v1887 = vpop.f32.mrf.mxu0
      %v1888 = vadd.f32 0.0, %v1887
      %v1889 = vpop.f32.mrf.mxu0
      %v1890 = vadd.f32 0.0, %v1889
      %1891 = vmatmul.bf16.gmra.mxu0 %v1801
      %v1892 = vpop.f32.mrf.mxu0
      %v1893 = vadd.f32 0.0, %v1892
      %v1894 = vpop.f32.mrf.mxu0
      %v1895 = vadd.f32 0.0, %v1894
      %1896 = vmatmul.bf16.gmra.mxu0 %v1803
      %v1897 = vpop.f32.mrf.mxu0
      %v1898 = vadd.f32 0.0, %v1897
      %v1899 = vpop.f32.mrf.mxu0
      %v1900 = vadd.f32 0.0, %v1899
      %1901 = vdwg.mxu0
      %1902 = vmatpush.bf16.msra.mxu0 %v1836
      %1903 = vmatpush.bf16.msra.mxu0 %v1834
      %1904 = vmatpush.bf16.msra.mxu0 %v1832
      %1905 = vmatpush.bf16.msra.mxu0 %v1830
      %1906 = vmatpush.bf16.msra.mxu0 %v1828
      %1907 = vmatpush.bf16.msra.mxu0 %v1826
      %1908 = vmatpush.bf16.msra.mxu0 %v1824
      %1909 = vmatpush.bf16.msra.mxu0 %v1822
      %1910 = vmatmul.bf16.gmra.mxu0 %v1790
      %v1911 = vpop.f32.mrf.mxu0
      %v1912 = vadd.f32 %v1863, %v1911
      %v1913 = vpop.f32.mrf.mxu0
      %v1914 = vadd.f32 %v1865, %v1913
      %1915 = vmatmul.bf16.gmra.mxu0 %v1792
      %v1916 = vpop.f32.mrf.mxu0
      %v1917 = vadd.f32 %v1868, %v1916
      %v1918 = vpop.f32.mrf.mxu0
      %v1919 = vadd.f32 %v1870, %v1918
      %1920 = vmatmul.bf16.gmra.mxu0 %v1794
      %v1921 = vpop.f32.mrf.mxu0
      %v1922 = vadd.f32 %v1873, %v1921
      %v1923 = vpop.f32.mrf.mxu0
      %v1924 = vadd.f32 %v1875, %v1923
      %1925 = vmatmul.bf16.gmra.mxu0 %v1796
      %v1926 = vpop.f32.mrf.mxu0
      %v1927 = vadd.f32 %v1878, %v1926
      %v1928 = vpop.f32.mrf.mxu0
      %v1929 = vadd.f32 %v1880, %v1928
      %1930 = vmatmul.bf16.gmra.mxu0 %v1798
      %v1931 = vpop.f32.mrf.mxu0
      %v1932 = vadd.f32 %v1883, %v1931
      %v1933 = vpop.f32.mrf.mxu0
      %v1934 = vadd.f32 %v1885, %v1933
      %1935 = vmatmul.bf16.gmra.mxu0 %v1800
      %v1936 = vpop.f32.mrf.mxu0
      %v1937 = vadd.f32 %v1888, %v1936
      %v1938 = vpop.f32.mrf.mxu0
      %v1939 = vadd.f32 %v1890, %v1938
      %1940 = vmatmul.bf16.gmra.mxu0 %v1802
      %v1941 = vpop.f32.mrf.mxu0
      %v1942 = vadd.f32 %v1893, %v1941
      %v1943 = vpop.f32.mrf.mxu0
      %v1944 = vadd.f32 %v1895, %v1943
      %1945 = vmatmul.bf16.gmra.mxu0 %v1804
      %v1946 = vpop.f32.mrf.mxu0
      %v1947 = vadd.f32 %v1898, %v1946
      %v1948 = vpop.f32.mrf.mxu0
      %v1949 = vadd.f32 %v1900, %v1948
      %1950 = vdwg.mxu0
      %v1951 = vrcp.pop %v1743
      %v1952 = vrcp.pop %v1746
      %v1953 = vrcp.pop %v1749
      %v1954 = vrcp.pop %v1752
      %v1955 = vrcp.pop %v1755
      %v1956 = vrcp.pop %v1758
      %v1957 = vrcp.pop %v1761
      %v1958 = vrcp.pop %v1764
      %v1959 = vrcp.pop %v1767
      %v1960 = vrcp.pop %v1770
      %v1961 = vrcp.pop %v1773
      %v1962 = vrcp.pop %v1776
      %v1963 = vrcp.pop %v1779
      %v1964 = vrcp.pop %v1782
      %v1965 = vrcp.pop %v1785
      %v1966 = vrcp.pop %v1788
      %v1967 = vmul.f32 %v1912, %v1951
      %v1968 = vmul.f32 %v1914, %v1952
      %v1969 = vmul.f32 %v1917, %v1953
      %v1970 = vmul.f32 %v1919, %v1954
      %v1971 = vmul.f32 %v1922, %v1955
      %v1972 = vmul.f32 %v1924, %v1956
      %v1973 = vmul.f32 %v1927, %v1957
      %v1974 = vmul.f32 %v1929, %v1958
      %v1975 = vmul.f32 %v1932, %v1959
      %v1976 = vmul.f32 %v1934, %v1960
      %v1977 = vmul.f32 %v1937, %v1961
      %v1978 = vmul.f32 %v1939, %v1962
      %v1979 = vmul.f32 %v1942, %v1963
      %v1980 = vmul.f32 %v1944, %v1964
      %v1981 = vmul.f32 %v1947, %v1965
      %v1982 = vmul.f32 %v1949, %v1966
      %v1983 = vld [vmem:[%s5 + $0x1] sm:$0x1]
      %v1984 = vperm.slane %v1983, 0
      %v1985 = vadd.f32 %v1967, %v1984
      %v1986 = vadd.f32 %v1968, %v1984
      %v1987 = vadd.f32 %v1969, %v1984
      %v1988 = vadd.f32 %v1970, %v1984
      %v1989 = vadd.f32 %v1971, %v1984
      %v1990 = vadd.f32 %v1972, %v1984
      %v1991 = vadd.f32 %v1973, %v1984
      %v1992 = vadd.f32 %v1974, %v1984
      %v1993 = vadd.f32 %v1975, %v1984
      %v1994 = vadd.f32 %v1976, %v1984
      %v1995 = vadd.f32 %v1977, %v1984
      %v1996 = vadd.f32 %v1978, %v1984
      %v1997 = vadd.f32 %v1979, %v1984
      %v1998 = vadd.f32 %v1980, %v1984
      %v1999 = vadd.f32 %v1981, %v1984
      %v2000 = vadd.f32 %v1982, %v1984
      %2017 = vrot.lane.b32.xlu0 %v1985, 16
      %v2018 = vpop.permute.xlu0 %2017
      %2019 = vrot.lane.b32.xlu0 %v1986, 16
      %v2020 = vpop.permute.xlu0 %2019
      %2021 = vrot.lane.b32.xlu0 %v1987, 16
      %v2022 = vpop.permute.xlu0 %2021
      %2023 = vrot.lane.b32.xlu0 %v1988, 16
      %v2024 = vpop.permute.xlu0 %2023
      %2025 = vrot.lane.b32.xlu0 %v1989, 16
      %v2026 = vpop.permute.xlu0 %2025
      %2027 = vrot.lane.b32.xlu0 %v1990, 16
      %v2028 = vpop.permute.xlu0 %2027
      %2029 = vrot.lane.b32.xlu0 %v1991, 16
      %v2030 = vpop.permute.xlu0 %2029
      %2031 = vrot.lane.b32.xlu0 %v1992, 16
      %v2032 = vpop.permute.xlu0 %2031
      %2033 = vrot.lane.b32.xlu0 %v1993, 16
      %v2034 = vpop.permute.xlu0 %2033
      %2035 = vrot.lane.b32.xlu0 %v1994, 16
      %v2036 = vpop.permute.xlu0 %2035
      %2037 = vrot.lane.b32.xlu0 %v1995, 16
      %v2038 = vpop.permute.xlu0 %2037
      %2039 = vrot.lane.b32.xlu0 %v1996, 16
      %v2040 = vpop.permute.xlu0 %2039
      %2041 = vrot.lane.b32.xlu0 %v1997, 16
      %v2042 = vpop.permute.xlu0 %2041
      %2043 = vrot.lane.b32.xlu0 %v1998, 16
      %v2044 = vpop.permute.xlu0 %2043
      %2045 = vrot.lane.b32.xlu0 %v1999, 16
      %v2046 = vpop.permute.xlu0 %2045
      %2047 = vrot.lane.b32.xlu0 %v2000, 16
      %v2048 = vpop.permute.xlu0 %2047
      %v2065 = vsel %vm401, %v1351, %v2018
      %v2066 = vsel %vm401, %v1352, %v2020
      %v2067 = vsel %vm401, %v1353, %v2022
      %v2068 = vsel %vm401, %v1354, %v2024
      %v2069 = vsel %vm401, %v1355, %v2026
      %v2070 = vsel %vm401, %v1356, %v2028
      %v2071 = vsel %vm401, %v1357, %v2030
      %v2072 = vsel %vm401, %v1358, %v2032
      %v2073 = vsel %vm401, %v1359, %v2034
      %v2074 = vsel %vm401, %v1360, %v2036
      %v2075 = vsel %vm401, %v1361, %v2038
      %v2076 = vsel %vm401, %v1362, %v2040
      %v2077 = vsel %vm401, %v1363, %v2042
      %v2078 = vsel %vm401, %v1364, %v2044
      %v2079 = vsel %vm401, %v1365, %v2046
      %v2080 = vsel %vm401, %v1366, %v2048
      %vm2081 = vcmp.gt.f32.partialorder %v2065, 0.0
      %vm2082 = vcmp.gt.f32.partialorder %v2066, 0.0
      %vm2083 = vcmp.gt.f32.partialorder %v2067, 0.0
      %vm2084 = vcmp.gt.f32.partialorder %v2068, 0.0
      %vm2085 = vcmp.gt.f32.partialorder %v2069, 0.0
      %vm2086 = vcmp.gt.f32.partialorder %v2070, 0.0
      %vm2087 = vcmp.gt.f32.partialorder %v2071, 0.0
      %vm2088 = vcmp.gt.f32.partialorder %v2072, 0.0
      %vm2089 = vcmp.gt.f32.partialorder %v2073, 0.0
      %vm2090 = vcmp.gt.f32.partialorder %v2074, 0.0
      %vm2091 = vcmp.gt.f32.partialorder %v2075, 0.0
      %vm2092 = vcmp.gt.f32.partialorder %v2076, 0.0
      %vm2093 = vcmp.gt.f32.partialorder %v2077, 0.0
      %vm2094 = vcmp.gt.f32.partialorder %v2078, 0.0
      %vm2095 = vcmp.gt.f32.partialorder %v2079, 0.0
      %vm2096 = vcmp.gt.f32.partialorder %v2080, 0.0
      %v2097 = vmin.f32 %v2065, 0.0
      %v2098 = vmin.f32 %v2066, 0.0
      %v2099 = vmin.f32 %v2067, 0.0
      %v2100 = vmin.f32 %v2068, 0.0
      %v2101 = vmin.f32 %v2069, 0.0
      %v2102 = vmin.f32 %v2070, 0.0
      %v2103 = vmin.f32 %v2071, 0.0
      %v2104 = vmin.f32 %v2072, 0.0
      %v2105 = vmin.f32 %v2073, 0.0
      %v2106 = vmin.f32 %v2074, 0.0
      %v2107 = vmin.f32 %v2075, 0.0
      %v2108 = vmin.f32 %v2076, 0.0
      %v2109 = vmin.f32 %v2077, 0.0
      %v2110 = vmin.f32 %v2078, 0.0
      %v2111 = vmin.f32 %v2079, 0.0
      %v2112 = vmin.f32 %v2080, 0.0
      %v2113 = vmul.f32 %v2097, 1.442695
      %v2114 = vpow.pop %v2113
      %v2115 = vmul.f32 %v2098, 1.442695
      %v2116 = vpow.pop %v2115
      %v2117 = vmul.f32 %v2099, 1.442695
      %v2118 = vpow.pop %v2117
      %v2119 = vmul.f32 %v2100, 1.442695
      %v2120 = vpow.pop %v2119
      %v2121 = vmul.f32 %v2101, 1.442695
      %v2122 = vpow.pop %v2121
      %v2123 = vmul.f32 %v2102, 1.442695
      %v2124 = vpow.pop %v2123
      %v2125 = vmul.f32 %v2103, 1.442695
      %v2126 = vpow.pop %v2125
      %v2127 = vmul.f32 %v2104, 1.442695
      %v2128 = vpow.pop %v2127
      %v2129 = vmul.f32 %v2105, 1.442695
      %v2130 = vpow.pop %v2129
      %v2131 = vmul.f32 %v2106, 1.442695
      %v2132 = vpow.pop %v2131
      %v2133 = vmul.f32 %v2107, 1.442695
      %v2134 = vpow.pop %v2133
      %v2135 = vmul.f32 %v2108, 1.442695
      %v2136 = vpow.pop %v2135
      %v2137 = vmul.f32 %v2109, 1.442695
      %v2138 = vpow.pop %v2137
      %v2139 = vmul.f32 %v2110, 1.442695
      %v2140 = vpow.pop %v2139
      %v2141 = vmul.f32 %v2111, 1.442695
      %v2142 = vpow.pop %v2141
      %v2143 = vmul.f32 %v2112, 1.442695
      %v2144 = vpow.pop %v2143
      %v2145 = vsub.f32 %v2114, 1.0
      %v2146 = vsub.f32 %v2116, 1.0
      %v2147 = vsub.f32 %v2118, 1.0
      %v2148 = vsub.f32 %v2120, 1.0
      %v2149 = vsub.f32 %v2122, 1.0
      %v2150 = vsub.f32 %v2124, 1.0
      %v2151 = vsub.f32 %v2126, 1.0
      %v2152 = vsub.f32 %v2128, 1.0
      %v2153 = vsub.f32 %v2130, 1.0
      %v2154 = vsub.f32 %v2132, 1.0
      %v2155 = vsub.f32 %v2134, 1.0
      %v2156 = vsub.f32 %v2136, 1.0
      %v2157 = vsub.f32 %v2138, 1.0
      %v2158 = vsub.f32 %v2140, 1.0
      %v2159 = vsub.f32 %v2142, 1.0
      %v2160 = vsub.f32 %v2144, 1.0
      %v2161 = vsel %vm2081, %v2065, %v2145
      %v2162 = vsel %vm2082, %v2066, %v2146
      %v2163 = vsel %vm2083, %v2067, %v2147
      %v2164 = vsel %vm2084, %v2068, %v2148
      %v2165 = vsel %vm2085, %v2069, %v2149
      %v2166 = vsel %vm2086, %v2070, %v2150
      %v2167 = vsel %vm2087, %v2071, %v2151
      %v2168 = vsel %vm2088, %v2072, %v2152
      %v2169 = vsel %vm2089, %v2073, %v2153
      %v2170 = vsel %vm2090, %v2074, %v2154
      %v2171 = vsel %vm2091, %v2075, %v2155
      %v2172 = vsel %vm2092, %v2076, %v2156
      %v2173 = vsel %vm2093, %v2077, %v2157
      %v2174 = vsel %vm2094, %v2078, %v2158
      %v2175 = vsel %vm2095, %v2079, %v2159
      %v2176 = vsel %vm2096, %v2080, %v2160
      %vm2177 = vcmask 261120
      %2178 = vst.msk [vmem:[%s278] sm:$0xff] %vm2177, %v2161
      %2179 = vst.msk [vmem:[%s278 + $0x8] sm:$0xff] %vm2177, %v2162
      %2180 = vst.msk [vmem:[%s278 + $0x10] sm:$0xff] %vm2177, %v2163
      %2181 = vst.msk [vmem:[%s278 + $0x18] sm:$0xff] %vm2177, %v2164
      %2182 = vst.msk [vmem:[%s278 + $0x20] sm:$0xff] %vm2177, %v2165
      %2183 = vst.msk [vmem:[%s278 + $0x28] sm:$0xff] %vm2177, %v2166
      %2184 = vst.msk [vmem:[%s278 + $0x30] sm:$0xff] %vm2177, %v2167
      %2185 = vst.msk [vmem:[%s278 + $0x38] sm:$0xff] %vm2177, %v2168
      %2186 = vst.msk [vmem:[%s278 + $0x40] sm:$0xff] %vm2177, %v2169
      %2187 = vst.msk [vmem:[%s278 + $0x48] sm:$0xff] %vm2177, %v2170
      %2188 = vst.msk [vmem:[%s278 + $0x50] sm:$0xff] %vm2177, %v2171
      %2189 = vst.msk [vmem:[%s278 + $0x58] sm:$0xff] %vm2177, %v2172
      %2190 = vst.msk [vmem:[%s278 + $0x60] sm:$0xff] %vm2177, %v2173
      %2191 = vst.msk [vmem:[%s278 + $0x68] sm:$0xff] %vm2177, %v2174
      %2192 = vst.msk [vmem:[%s278 + $0x70] sm:$0xff] %vm2177, %v2175
      %2193 = vst.msk [vmem:[%s278 + $0x78] sm:$0xff] %vm2177, %v2176
      %s2194 = smul.u32 16, %s17
      %p2195 = scmp.lt.s32.totalorder %s2194, 31
      %s2196 = scalar_select %p2195, %s2194, 31
      %s2197 = smul.addr %s2196, 8
      %s2198 = scalar_lea.vmem %s6, %s2197
      // Predicated region
      $region45: #{tpu_custom_call.1} parent=43 // pred_check
        %p2199 = pneg %p171
      $region46: #{tpu_custom_call.1} parent=43 // pred_check_branch
        %2201 = sbr.rel (%p2199) target = $region48
      $region47: #{tpu_custom_call.1} parent=43 // pred_region
        %s2202 = smul.u32 16, %s17
      $region48: #{tpu_custom_call.1} parent=43 // pred_fallthru
        _
    $region44: #{tpu_custom_call.1} parent=5 // pred_fallthru
      _
    %p2203 = scmp.le.s32.totalorder 2, %s12
    // Predicated region
    $region49: #{tpu_custom_call.1} parent=5 // pred_check
      %p2204 = pneg %p2203
    $region50: #{tpu_custom_call.1} parent=5 // pred_check_branch
      %2206 = sbr.rel (%p2204) target = $region52
    $region51: #{tpu_custom_call.1} parent=5 // pred_region
      %s2207 = ssub.s32 %s12, 2
      // Predicated region
      $region53: #{tpu_custom_call.1} parent=51 // pred_check
        %p2208 = pneg %p177
      $region54: #{tpu_custom_call.1} parent=51 // pred_check_branch
        %2210 = sbr.rel (%p2208) target = $region56
      $region55: #{tpu_custom_call.1} parent=51 // pred_region
        %s2211 = smul.u32 16, %s18
        %p2212 = scmp.lt.s32.totalorder %s2211, 31
        %s2213 = scalar_select %p2212, %s2211, 31
        %s2214 = smul.addr %s2213, 8
        %s2215 = scalar_lea.vmem %s6, %s2214
      $region56: #{tpu_custom_call.1} parent=51 // pred_fallthru
        _
    $region52: #{tpu_custom_call.1} parent=5 // pred_fallthru
      _
  $region6: #{tpu_custom_call.1} parent=0 // loop_footer
    %s16 = sadd.s32 1, %s12
  $region7: #{tpu_custom_call.1} parent=0 // loop_footer_branch
    %11 = sbr.rel target = $region3
  $region8: #{tpu_custom_call.1} parent=0 // loop_exit
    _

</llo_original>
